<compile_context>
chip_gen: v7x
topology: tpu7x:2x2x1
jax: 0.10.0
libtpu: 0.0.40
codegen_flags: <defaults>
</compile_context>

<pallas_src>
import functools

import jax
import jax.numpy as jnp
from jax.experimental import pallas as pl
from jax.experimental.pallas import tpu as pltpu


def _round_up(x, m):
    return ((x + m - 1) // m) * m


def tree_lstm_kernel(hl_ref, hr_ref, cl_ref, cr_ref, w_ref, b_ref,
                     h_out_ref, c_out_ref, *, mm_dtype):
    """One batch tile of the TreeLSTM cell.

    hl_ref, hr_ref: (tm, U)  child hidden states (native dtype; cast in VMEM)
    cl_ref, cr_ref: (tm, U)  child cell states   (native dtype)
    w_ref : (2U, 5U) mm_dtype -- [W_left^T ; W_right^T], VMEM-resident
    b_ref : (1, 5U)  f32      -- b_left + b_right, VMEM-resident
    """
    U = h_out_ref.shape[1]

    # Two accumulated MXU matmuls (K = U each), f32 accumulation, + bias.
    # Casting to bf16 happens here in VMEM, not as a separate XLA HBM pass.
    hl = hl_ref[...].astype(mm_dtype)
    hr = hr_ref[...].astype(mm_dtype)
    lstm_in = jnp.dot(hl, w_ref[:U, :], preferred_element_type=jnp.float32)
    lstm_in = lstm_in + jnp.dot(hr, w_ref[U:, :],
                                preferred_element_type=jnp.float32)
    lstm_in = lstm_in + b_ref[...]

    # torch.chunk(5, dim=1) -> five static, lane-aligned slices of width U.
    a  = lstm_in[:, 0 * U:1 * U]
    i  = lstm_in[:, 1 * U:2 * U]
    f1 = lstm_in[:, 2 * U:3 * U]
    f2 = lstm_in[:, 3 * U:4 * U]
    o  = lstm_in[:, 4 * U:5 * U]

    c_l = cl_ref[...].astype(jnp.float32)
    c_r = cr_ref[...].astype(jnp.float32)

    # sigmoid(x) == 0.5*(tanh(0.5*x) + 1): one EUP op per gate, rest on VALU.
    def sig(x):
        return 0.5 * (jnp.tanh(0.5 * x) + 1.0)

    c = jnp.tanh(a) * sig(i) + sig(f1) * c_l + sig(f2) * c_r
    h = sig(o) * jnp.tanh(c)

    h_out_ref[...] = h.astype(h_out_ref.dtype)
    c_out_ref[...] = c.astype(c_out_ref.dtype)   # f32 cell state


def prepare_tree_lstm_params(w_left, b_left, w_right, b_right, *, use_bf16=True):
    """Fuse nn.Linear params ONCE (outside the SPINN composition loop).

    w_left / w_right: (5U, U) as in nn.Linear; b_left / b_right: (5U,).
    Returns W (2U, 5U) in matmul dtype and bias (1, 5U) f32.
    """
    mm_dtype = jnp.bfloat16 if use_bf16 else w_left.dtype
    W = jnp.concatenate([w_left.T, w_right.T], axis=0).astype(mm_dtype)
    bias = (b_left.astype(jnp.float32)
            + b_right.astype(jnp.float32)).reshape(1, -1)
    return W, bias


@functools.partial(jax.jit, static_argnames=("batch_tile",))
def tree_lstm(left_in, right_in, w_fused, b_fused, *, batch_tile=512):
    """left_in / right_in are (h, c) tuples of shape (B, U) each.

    w_fused / b_fused come from prepare_tree_lstm_params (reused every call).
    Returns (h, c): h has the dtype of h_l, c is f32.
    """
    h_l, c_l = left_in
    h_r, c_r = right_in
    B, U = h_l.shape
    F = 5 * U
    out_dtype = h_l.dtype
    mm_dtype = w_fused.dtype
    # TODO(synk): if U is not a multiple of 128 the gate slices are not
    # lane-aligned (still correct, but lowers to cross-lane shuffles).

    # ---- batch tiling (no HBM padding: partial last block is masked) -------
    row_align = 16  # bf16 sublane pairing; also valid for f32.
    # Clamp tm so the grid has >= 2 steps when possible: on v7x both
    # TensorCores pick up "parallel" grid steps; on v5e/v6e the extra step
    # only costs ~0.35us.
    half_b = (B + 1) // 2
    tm = min(batch_tile, _round_up(max(half_b, row_align), row_align))
    grid = (pl.cdiv(B, tm),)

    act_spec = lambda: pl.BlockSpec((tm, U), lambda i: (i, 0))
    resident = lambda shape: pl.BlockSpec(shape, lambda i: (0, 0))

    kernel = functools.partial(tree_lstm_kernel, mm_dtype=mm_dtype)

    h_out, c_out = pl.pallas_call(
        kernel,
        out_shape=(jax.ShapeDtypeStruct((B, U), out_dtype),
                   jax.ShapeDtypeStruct((B, U), jnp.float32)),
        grid=grid,
        in_specs=[act_spec(),                 # h_l (tiled over batch)
                  act_spec(),                 # h_r
                  act_spec(),                 # c_l
                  act_spec(),                 # c_r
                  resident((2 * U, F)),       # W    (VMEM-resident)
                  resident((1, F))],          # bias (VMEM-resident)
        out_specs=(act_spec(), act_spec()),
        compiler_params=pltpu.CompilerParams(
            dimension_semantics=("parallel",)),   # megacore split on v7x
    )(h_l, h_r, c_l, c_r, w_fused, b_fused)

    return h_out, c_out


def tree_lstm_ref(left_in, right_in, w_left, b_left, w_right, b_right,
                  *, use_bf16=True):
    """Pure-JAX reference mirroring the PyTorch module (same operand casts)."""
    h_l, c_l = left_in
    h_r, c_r = right_in
    U = h_l.shape[1]
    mm_dtype = jnp.bfloat16 if use_bf16 else h_l.dtype
    lstm_in = (jnp.dot(h_l.astype(mm_dtype), w_left.T.astype(mm_dtype),
                       preferred_element_type=jnp.float32)
               + jnp.dot(h_r.astype(mm_dtype), w_right.T.astype(mm_dtype),
                         preferred_element_type=jnp.float32)
               + (b_left + b_right))
    a, i, f1, f2, o = [lstm_in[:, k * U:(k + 1) * U] for k in range(5)]
    c = (jnp.tanh(a) * jax.nn.sigmoid(i)
         + jax.nn.sigmoid(f1) * c_l.astype(jnp.float32)
         + jax.nn.sigmoid(f2) * c_r.astype(jnp.float32))
    h = jax.nn.sigmoid(o) * jnp.tanh(c)
    return h.astype(h_l.dtype), c


if __name__ == "__main__":
    B = 64         # batch of tree nodes
    U = 128        # num_units (lane-aligned)

    key = jax.random.PRNGKey(0)
    k = jax.random.split(key, 8)

    # Deterministic parameter init (PyTorch nn.Linear-style uniform bound).
    bound = 1.0 / (U ** 0.5)
    w_left  = jax.random.uniform(k[0], (5 * U, U), jnp.float32, -bound, bound)
    b_left  = jax.random.uniform(k[1], (5 * U,),  jnp.float32, -bound, bound)
    w_right = jax.random.uniform(k[2], (5 * U, U), jnp.float32, -bound, bound)
    b_right = jax.random.uniform(k[3], (5 * U,),  jnp.float32, -bound, bound)

    # Example inputs: (h, c) pairs for left and right children.
    h_l = jax.random.normal(k[4], (B, U), jnp.float32)
    c_l = jax.random.normal(k[5], (B, U), jnp.float32)
    h_r = jax.random.normal(k[6], (B, U), jnp.float32)
    c_r = jax.random.normal(k[7], (B, U), jnp.float32)

    # Fuse the Linear params once (reused across all SPINN composition steps).
    W_fused, b_fused = prepare_tree_lstm_params(
        w_left, b_left, w_right, b_right, use_bf16=True)

    h_out, c_out = tree_lstm((h_l, c_l), (h_r, c_r), W_fused, b_fused,
                             batch_tile=512)
    jax.block_until_ready((h_out, c_out))

    h_ref, c_ref = tree_lstm_ref((h_l, c_l), (h_r, c_r),
                                 w_left, b_left, w_right, b_right,
                                 use_bf16=True)
    assert jnp.allclose(h_out, h_ref, atol=2e-3, rtol=2e-3), (
        float(jnp.max(jnp.abs(h_out - h_ref))))
    assert jnp.allclose(c_out, c_ref, atol=2e-3, rtol=2e-3), (
        float(jnp.max(jnp.abs(c_out - c_ref))))

    print("KERNEL_OK")
</pallas_src>

<mosaic_0001>
module attributes {stable_mosaic.version = 11 : i64} {
  func.func @tree_lstm_kernel(%arg0: i32, %arg1: memref<32x128xf32, #tpu.memory_space<vmem>>, %arg2: memref<32x128xf32, #tpu.memory_space<vmem>>, %arg3: memref<32x128xf32, #tpu.memory_space<vmem>>, %arg4: memref<32x128xf32, #tpu.memory_space<vmem>>, %arg5: memref<256x640xbf16, #tpu.memory_space<vmem>>, %arg6: memref<1x640xf32, #tpu.memory_space<vmem>>, %arg7: memref<32x128xf32, #tpu.memory_space<vmem>>, %arg8: memref<32x128xf32, #tpu.memory_space<vmem>>) attributes {dimension_semantics = [#tpu.dimension_semantics<parallel>], iteration_bounds = array<i64: 2>, scalar_prefetch = 0 : i64, scratch_operands = 0 : i64, tpu.core_type = #tpu.core_type<tc>, window_params = [{transform_indices = @transform_0, window_bounds = array<i64: 32, 128>}, {transform_indices = @transform_1, window_bounds = array<i64: 32, 128>}, {transform_indices = @transform_2, window_bounds = array<i64: 32, 128>}, {transform_indices = @transform_3, window_bounds = array<i64: 32, 128>}, {pipeline_mode = #tpu.pipeline_mode<synchronous>, transform_indices = @transform_4, window_bounds = array<i64: 256, 640>}, {pipeline_mode = #tpu.pipeline_mode<synchronous>, transform_indices = @transform_5, window_bounds = array<i64: 1, 640>}, {transform_indices = @transform_6, window_bounds = array<i64: 32, 128>}, {transform_indices = @transform_7, window_bounds = array<i64: 32, 128>}]} {
    %c0 = arith.constant 0 : index
    %c0_0 = arith.constant 0 : index
    %0 = vector.load %arg1[%c0, %c0_0] : memref<32x128xf32, #tpu.memory_space<vmem>>, vector<32x128xf32>
    %1 = arith.truncf %0 : vector<32x128xf32> to vector<32x128xbf16>
    %c0_1 = arith.constant 0 : index
    %c0_2 = arith.constant 0 : index
    %2 = vector.load %arg2[%c0_1, %c0_2] : memref<32x128xf32, #tpu.memory_space<vmem>>, vector<32x128xf32>
    %3 = arith.truncf %2 : vector<32x128xf32> to vector<32x128xbf16>
    %c0_3 = arith.constant 0 : index
    %c0_4 = arith.constant 0 : index
    %4 = vector.load %arg5[%c0_3, %c0_4] : memref<256x640xbf16, #tpu.memory_space<vmem>>, vector<128x640xbf16>
    %cst = arith.constant dense<0.000000e+00> : vector<32x640xf32>
    %5 = tpu.matmul %1, %4, %cst {dimension_numbers = #tpu.dot_dimension_numbers<[1], [0], [0], [1], [0, 0, 1, 1], [], []>} : vector<32x128xbf16>, vector<128x640xbf16>, vector<32x640xf32> -> vector<32x640xf32>
    %c128 = arith.constant 128 : index
    %c0_5 = arith.constant 0 : index
    %6 = vector.load %arg5[%c128, %c0_5] : memref<256x640xbf16, #tpu.memory_space<vmem>>, vector<128x640xbf16>
    %cst_6 = arith.constant dense<0.000000e+00> : vector<32x640xf32>
    %7 = tpu.matmul %3, %6, %cst_6 {dimension_numbers = #tpu.dot_dimension_numbers<[1], [0], [0], [1], [0, 0, 1, 1], [], []>} : vector<32x128xbf16>, vector<128x640xbf16>, vector<32x640xf32> -> vector<32x640xf32>
    %8 = arith.addf %5, %7 : vector<32x640xf32>
    %c0_7 = arith.constant 0 : index
    %c0_8 = arith.constant 0 : index
    %9 = vector.load %arg6[%c0_7, %c0_8] : memref<1x640xf32, #tpu.memory_space<vmem>>, vector<1x640xf32>
    %10 = vector.broadcast %9 : vector<1x640xf32> to vector<32x640xf32>
    %11 = arith.addf %8, %10 : vector<32x640xf32>
    %12 = vector.extract_strided_slice %11 {offsets = [0, 0], sizes = [32, 128], strides = [1, 1]} : vector<32x640xf32> to vector<32x128xf32>
    %13 = vector.extract_strided_slice %11 {offsets = [0, 128], sizes = [32, 128], strides = [1, 1]} : vector<32x640xf32> to vector<32x128xf32>
    %14 = vector.extract_strided_slice %11 {offsets = [0, 256], sizes = [32, 128], strides = [1, 1]} : vector<32x640xf32> to vector<32x128xf32>
    %15 = vector.extract_strided_slice %11 {offsets = [0, 384], sizes = [32, 128], strides = [1, 1]} : vector<32x640xf32> to vector<32x128xf32>
    %16 = vector.extract_strided_slice %11 {offsets = [0, 512], sizes = [32, 128], strides = [1, 1]} : vector<32x640xf32> to vector<32x128xf32>
    %c0_9 = arith.constant 0 : index
    %c0_10 = arith.constant 0 : index
    %17 = vector.load %arg3[%c0_9, %c0_10] : memref<32x128xf32, #tpu.memory_space<vmem>>, vector<32x128xf32>
    %c0_11 = arith.constant 0 : index
    %c0_12 = arith.constant 0 : index
    %18 = vector.load %arg4[%c0_11, %c0_12] : memref<32x128xf32, #tpu.memory_space<vmem>>, vector<32x128xf32>
    %19 = math.tanh %12 : vector<32x128xf32>
    %cst_13 = arith.constant 5.000000e-01 : f32
    %20 = vector.broadcast %cst_13 : f32 to vector<32x128xf32>
    %21 = arith.mulf %20, %13 : vector<32x128xf32>
    %22 = math.tanh %21 : vector<32x128xf32>
    %cst_14 = arith.constant 1.000000e+00 : f32
    %23 = vector.broadcast %cst_14 : f32 to vector<32x128xf32>
    %24 = arith.addf %22, %23 : vector<32x128xf32>
    %cst_15 = arith.constant 5.000000e-01 : f32
    %25 = vector.broadcast %cst_15 : f32 to vector<32x128xf32>
    %26 = arith.mulf %25, %24 : vector<32x128xf32>
    %27 = arith.mulf %19, %26 : vector<32x128xf32>
    %cst_16 = arith.constant 5.000000e-01 : f32
    %28 = vector.broadcast %cst_16 : f32 to vector<32x128xf32>
    %29 = arith.mulf %28, %14 : vector<32x128xf32>
    %30 = math.tanh %29 : vector<32x128xf32>
    %cst_17 = arith.constant 1.000000e+00 : f32
    %31 = vector.broadcast %cst_17 : f32 to vector<32x128xf32>
    %32 = arith.addf %30, %31 : vector<32x128xf32>
    %cst_18 = arith.constant 5.000000e-01 : f32
    %33 = vector.broadcast %cst_18 : f32 to vector<32x128xf32>
    %34 = arith.mulf %33, %32 : vector<32x128xf32>
    %35 = arith.mulf %34, %17 : vector<32x128xf32>
    %36 = arith.addf %27, %35 : vector<32x128xf32>
    %cst_19 = arith.constant 5.000000e-01 : f32
    %37 = vector.broadcast %cst_19 : f32 to vector<32x128xf32>
    %38 = arith.mulf %37, %15 : vector<32x128xf32>
    %39 = math.tanh %38 : vector<32x128xf32>
    %cst_20 = arith.constant 1.000000e+00 : f32
    %40 = vector.broadcast %cst_20 : f32 to vector<32x128xf32>
    %41 = arith.addf %39, %40 : vector<32x128xf32>
    %cst_21 = arith.constant 5.000000e-01 : f32
    %42 = vector.broadcast %cst_21 : f32 to vector<32x128xf32>
    %43 = arith.mulf %42, %41 : vector<32x128xf32>
    %44 = arith.mulf %43, %18 : vector<32x128xf32>
    %45 = arith.addf %36, %44 : vector<32x128xf32>
    %cst_22 = arith.constant 5.000000e-01 : f32
    %46 = vector.broadcast %cst_22 : f32 to vector<32x128xf32>
    %47 = arith.mulf %46, %16 : vector<32x128xf32>
    %48 = math.tanh %47 : vector<32x128xf32>
    %cst_23 = arith.constant 1.000000e+00 : f32
    %49 = vector.broadcast %cst_23 : f32 to vector<32x128xf32>
    %50 = arith.addf %48, %49 : vector<32x128xf32>
    %cst_24 = arith.constant 5.000000e-01 : f32
    %51 = vector.broadcast %cst_24 : f32 to vector<32x128xf32>
    %52 = arith.mulf %51, %50 : vector<32x128xf32>
    %53 = math.tanh %45 : vector<32x128xf32>
    %54 = arith.mulf %52, %53 : vector<32x128xf32>
    %c0_25 = arith.constant 0 : index
    %c0_26 = arith.constant 0 : index
    %55 = vector.load %arg7[%c0_25, %c0_26] : memref<32x128xf32, #tpu.memory_space<vmem>>, vector<32x128xf32>
    tpu.vector_store %arg7[%c0_25, %c0_26], %54 {strides = array<i32>} : memref<32x128xf32, #tpu.memory_space<vmem>>, vector<32x128xf32>,
    %c0_27 = arith.constant 0 : index
    %c0_28 = arith.constant 0 : index
    %56 = vector.load %arg8[%c0_27, %c0_28] : memref<32x128xf32, #tpu.memory_space<vmem>>, vector<32x128xf32>
    tpu.vector_store %arg8[%c0_27, %c0_28], %45 {strides = array<i32>} : memref<32x128xf32, #tpu.memory_space<vmem>>, vector<32x128xf32>,
    return
  }
  func.func @transform_0(%arg0: i32) -> (i32, i32) {
    %c0_i32 = arith.constant 0 : i32
    %c0_i32_0 = arith.constant 0 : i32
    return %arg0, %c0_i32 : i32, i32
  }
  func.func @transform_1(%arg0: i32) -> (i32, i32) {
    %c0_i32 = arith.constant 0 : i32
    %c0_i32_0 = arith.constant 0 : i32
    return %arg0, %c0_i32 : i32, i32
  }
  func.func @transform_2(%arg0: i32) -> (i32, i32) {
    %c0_i32 = arith.constant 0 : i32
    %c0_i32_0 = arith.constant 0 : i32
    return %arg0, %c0_i32 : i32, i32
  }
  func.func @transform_3(%arg0: i32) -> (i32, i32) {
    %c0_i32 = arith.constant 0 : i32
    %c0_i32_0 = arith.constant 0 : i32
    return %arg0, %c0_i32 : i32, i32
  }
  func.func @transform_4(%arg0: i32) -> (i32, i32) {
    %c0_i32 = arith.constant 0 : i32
    %c0_i32_0 = arith.constant 0 : i32
    %c0_i32_1 = arith.constant 0 : i32
    return %c0_i32, %c0_i32_0 : i32, i32
  }
  func.func @transform_5(%arg0: i32) -> (i32, i32) {
    %c0_i32 = arith.constant 0 : i32
    %c0_i32_0 = arith.constant 0 : i32
    %c0_i32_1 = arith.constant 0 : i32
    return %c0_i32, %c0_i32_0 : i32, i32
  }
  func.func @transform_6(%arg0: i32) -> (i32, i32) {
    %c0_i32 = arith.constant 0 : i32
    %c0_i32_0 = arith.constant 0 : i32
    return %arg0, %c0_i32 : i32, i32
  }
  func.func @transform_7(%arg0: i32) -> (i32, i32) {
    %c0_i32 = arith.constant 0 : i32
    %c0_i32_0 = arith.constant 0 : i32
    return %arg0, %c0_i32 : i32, i32
  }
}

</mosaic_0001>

<llo_original>
// kernel: tree_lstm.1
$region0: #{tree_lstm.1}
  #allocation0 [shape = 'u32[]', space=smem, size = 0x4, offset = 0x4, fixed_abs, tag = 'smem constant byte address 0x4 - core index']
  #allocation1 [shape = 'u32[144,128]{1,0:T(1,128)}', space=vmem, size = 0x12000, scoped, tag = 'internal scratch']
  %s0 = inlined_call_operand.hbm [shape: f32[64,128], index: 0, kind: input, shape index: {}]
  %s1 = inlined_call_operand.hbm [shape: f32[64,128], index: 1, kind: input, shape index: {}]
  %s2 = inlined_call_operand.hbm [shape: f32[64,128], index: 2, kind: input, shape index: {}]
  %s3 = inlined_call_operand.hbm [shape: f32[64,128], index: 3, kind: input, shape index: {}]
  %s4 = inlined_call_operand.hbm [shape: bf16[256,640], index: 4, kind: input, shape index: {}]
  %s5 = inlined_call_operand.vmem [shape: f32[1,640], index: 5, kind: input, shape index: {}]
  %s6 = inlined_call_operand.hbm [shape: f32[64,128], index: 6, kind: output, shape index: {0}]
  %s7 = inlined_call_operand.hbm [shape: f32[64,128], index: 7, kind: output, shape index: {1}]
  %8 = xla_tuple %s6, %s7
  %s9 = sld [smem:[#allocation0]]
  $region85: #{tree_lstm.1} parent=0
    _
  %s11 = ssub.s32 1, %s9
  %s12 = scalar_select 0, %s11, %s9
  $region1: #{tree_lstm.1} parent=0
    #allocation2 [shape = 'u8[32768]{0}', space=vmem, size = 0x8000, scoped, tag = 'input window, operand 0']
    #allocation3 [shape = 's32[2]{0}', space=sflag, size = 0x8, scoped, tag = 'scoped memory for tree_lstm.1']
    #allocation4 [shape = 's32[2]{0}', space=sflag, size = 0x8, scoped, tag = 'scoped memory for tree_lstm.1']
    #allocation5 [shape = 'u8[32768]{0}', space=vmem, size = 0x8000, scoped, tag = 'input window, operand 1']
    #allocation6 [shape = 's32[2]{0}', space=sflag, size = 0x8, scoped, tag = 'scoped memory for tree_lstm.1']
    #allocation7 [shape = 'u8[32768]{0}', space=vmem, size = 0x8000, scoped, tag = 'input window, operand 2']
    #allocation8 [shape = 'u8[32768]{0}', space=vmem, size = 0x8000, scoped, tag = 'input window, operand 3']
    #allocation9 [shape = 's32[2]{0}', space=sflag, size = 0x8, scoped, tag = 'scoped memory for tree_lstm.1']
    #allocation10 [shape = 'u8[327680]{0}', space=vmem, size = 0x50000, scoped, tag = 'input window, operand 4, single buffered']
    #allocation11 [shape = 'u8[32768]{0}', space=vmem, size = 0x8000, scoped, tag = 'output window, operand 0']
    #allocation12 [shape = 'u8[32768]{0}', space=vmem, size = 0x8000, scoped, tag = 'output window, operand 1']
    #allocation13 [shape = 's32[2]{0}', space=sflag, size = 0x8, scoped, tag = 'scoped memory for tree_lstm.1']
    %13 = vsyncpa [#allocation3], 0
    %s14 = scalar_lea.sflag [#allocation3], 1
    %15 = vsyncpa %s14, 0
    %16 = vsyncpa [#allocation6], 0
    %s17 = scalar_lea.sflag [#allocation6], 1
    %18 = vsyncpa %s17, 0
    %19 = vsyncpa [#allocation9], 0
    %s20 = scalar_lea.sflag [#allocation9], 1
    %21 = vsyncpa %s20, 0
    %22 = vsyncpa [#allocation4], 0
    %s23 = scalar_lea.sflag [#allocation4], 1
    %24 = vsyncpa %s23, 0
    %25 = vsyncpa [#allocation13], 0
    %s26 = scalar_lea.sflag [#allocation13], 1
    %27 = vsyncpa %s26, 0
    loop: start=0, step=1, limit=4
    $region2: #{tree_lstm.1} parent=1 // loop_pre_header
      _
    $region3: #{tree_lstm.1} parent=1 // loop_header
      %s29 = sphi 0, %s33
      %p30 = scmp.ge.s32.totalorder %s29, 4
      %s39 = sphi 0, %s41
      %s42 = sphi 0, %s39
      %s43 = sphi 0, %s42
      %s59 = sphi 0, %s43
      %s65 = sphi 0, %s67
      %s68 = sphi 0, %s65
      %s69 = sphi 0, %s68
      %s85 = sphi 0, %s69
      %s91 = sphi 0, %s93
      %s94 = sphi 0, %s91
      %s95 = sphi 0, %s94
      %s111 = sphi 0, %s95
      %s117 = sphi 0, %s119
      %s120 = sphi 0, %s117
      %s121 = sphi 0, %s120
      %s137 = sphi 0, %s121
      %s141 = sphi 0, %s141
      %s143 = sphi 0, %s141
      %s144 = sphi 0, %s143
      %s158 = sphi 0, %s144
      %s162 = sphi 0, %s162
      %s164 = sphi 0, %s162
      %s165 = sphi 0, %s164
      %s179 = sphi 0, %s165
      %s185 = sphi 0, %s187
      %s188 = sphi 0, %s185
      %s189 = sphi 0, %s188
      %s205 = sphi 0, %s189
      %s211 = sphi 0, %s213
      %s214 = sphi 0, %s211
      %s215 = sphi 0, %s214
      %s231 = sphi 0, %s215
    $region4: #{tree_lstm.1} parent=1 // loop_header_branch
      %32 = sbr.rel (%p30) target = $region8
    $region5: #{tree_lstm.1} parent=1 // loop_body
      %s34 = ssub.s32 %s29, 1
      %s35 = ssub.s32 %s29, 2
      %s36 = sadd.s32 %s29, 1
      %s37 = ssub.s32 %s29, %s36
      %p38 = scmp.eq.s32.totalorder %s37, 0
      %s40 = sadd.s32 %s39, 1
      %s41 = scalar_select %p38, %s39, %s40
      %p44 = pneg %p38
      %p45 = scmp.eq.s32.totalorder %s29, 1
      %p46 = por %p44, %p45
      %p47 = scmp.ne.s32.totalorder %s39, %s42
      %p48 = scmp.eq.s32.totalorder %s29, 0
      %p49 = por %p47, %p48
      %p50 = scmp.ne.s32.totalorder %s39, %s42
      %p51 = scmp.eq.s32.totalorder %s34, 1
      %p52 = por %p50, %p51
      %p53 = scmp.ne.s32.totalorder %s42, %s43
      %p54 = scmp.eq.s32.totalorder %s34, 0
      %p55 = por %p53, %p54
      %p56 = scmp.ne.s32.totalorder %s42, %s43
      %p57 = scmp.eq.s32.totalorder %s35, 1
      %p58 = por %p56, %p57
      %p60 = scmp.ne.s32.totalorder %s43, %s59
      %p61 = scmp.eq.s32.totalorder %s35, 0
      %p62 = por %p60, %p61
      %s63 = ssub.s32 %s29, %s36
      %p64 = scmp.eq.s32.totalorder %s63, 0
      %s66 = sadd.s32 %s65, 1
      %s67 = scalar_select %p64, %s65, %s66
      %p70 = pneg %p64
      %p71 = scmp.eq.s32.totalorder %s29, 1
      %p72 = por %p70, %p71
      %p73 = scmp.ne.s32.totalorder %s65, %s68
      %p74 = scmp.eq.s32.totalorder %s29, 0
      %p75 = por %p73, %p74
      %p76 = scmp.ne.s32.totalorder %s65, %s68
      %p77 = scmp.eq.s32.totalorder %s34, 1
      %p78 = por %p76, %p77
      %p79 = scmp.ne.s32.totalorder %s68, %s69
      %p80 = scmp.eq.s32.totalorder %s34, 0
      %p81 = por %p79, %p80
      %p82 = scmp.ne.s32.totalorder %s68, %s69
      %p83 = scmp.eq.s32.totalorder %s35, 1
      %p84 = por %p82, %p83
      %p86 = scmp.ne.s32.totalorder %s69, %s85
      %p87 = scmp.eq.s32.totalorder %s35, 0
      %p88 = por %p86, %p87
      %s89 = ssub.s32 %s29, %s36
      %p90 = scmp.eq.s32.totalorder %s89, 0
      %s92 = sadd.s32 %s91, 1
      %s93 = scalar_select %p90, %s91, %s92
      %p96 = pneg %p90
      %p97 = scmp.eq.s32.totalorder %s29, 1
      %p98 = por %p96, %p97
      %p99 = scmp.ne.s32.totalorder %s91, %s94
      %p100 = scmp.eq.s32.totalorder %s29, 0
      %p101 = por %p99, %p100
      %p102 = scmp.ne.s32.totalorder %s91, %s94
      %p103 = scmp.eq.s32.totalorder %s34, 1
      %p104 = por %p102, %p103
      %p105 = scmp.ne.s32.totalorder %s94, %s95
      %p106 = scmp.eq.s32.totalorder %s34, 0
      %p107 = por %p105, %p106
      %p108 = scmp.ne.s32.totalorder %s94, %s95
      %p109 = scmp.eq.s32.totalorder %s35, 1
      %p110 = por %p108, %p109
      %p112 = scmp.ne.s32.totalorder %s95, %s111
      %p113 = scmp.eq.s32.totalorder %s35, 0
      %p114 = por %p112, %p113
      %s115 = ssub.s32 %s29, %s36
      %p116 = scmp.eq.s32.totalorder %s115, 0
      %s118 = sadd.s32 %s117, 1
      %s119 = scalar_select %p116, %s117, %s118
      %p122 = pneg %p116
      %p123 = scmp.eq.s32.totalorder %s29, 1
      %p124 = por %p122, %p123
      %p125 = scmp.ne.s32.totalorder %s117, %s120
      %p126 = scmp.eq.s32.totalorder %s29, 0
      %p127 = por %p125, %p126
      %p128 = scmp.ne.s32.totalorder %s117, %s120
      %p129 = scmp.eq.s32.totalorder %s34, 1
      %p130 = por %p128, %p129
      %p131 = scmp.ne.s32.totalorder %s120, %s121
      %p132 = scmp.eq.s32.totalorder %s34, 0
      %p133 = por %p131, %p132
      %p134 = scmp.ne.s32.totalorder %s120, %s121
      %p135 = scmp.eq.s32.totalorder %s35, 1
      %p136 = por %p134, %p135
      %p138 = scmp.ne.s32.totalorder %s121, %s137
      %p139 = scmp.eq.s32.totalorder %s35, 0
      %p140 = por %p138, %p139
      %s142 = sadd.s32 %s141, 1
      %p145 = scmp.eq.s32.totalorder %s29, 1
      %p146 = scmp.ne.s32.totalorder %s141, %s143
      %p147 = scmp.eq.s32.totalorder %s29, 0
      %p148 = por %p146, %p147
      %p149 = scmp.ne.s32.totalorder %s141, %s143
      %p150 = scmp.eq.s32.totalorder %s34, 1
      %p151 = por %p149, %p150
      %p152 = scmp.ne.s32.totalorder %s143, %s144
      %p153 = scmp.eq.s32.totalorder %s34, 0
      %p154 = por %p152, %p153
      %p155 = scmp.ne.s32.totalorder %s143, %s144
      %p156 = scmp.eq.s32.totalorder %s35, 1
      %p157 = por %p155, %p156
      %p159 = scmp.ne.s32.totalorder %s144, %s158
      %p160 = scmp.eq.s32.totalorder %s35, 0
      %p161 = por %p159, %p160
      %s163 = sadd.s32 %s162, 1
      %p166 = scmp.eq.s32.totalorder %s29, 1
      %p167 = scmp.ne.s32.totalorder %s162, %s164
      %p168 = scmp.eq.s32.totalorder %s29, 0
      %p169 = por %p167, %p168
      %p170 = scmp.ne.s32.totalorder %s162, %s164
      %p171 = scmp.eq.s32.totalorder %s34, 1
      %p172 = por %p170, %p171
      %p173 = scmp.ne.s32.totalorder %s164, %s165
      %p174 = scmp.eq.s32.totalorder %s34, 0
      %p175 = por %p173, %p174
      %p176 = scmp.ne.s32.totalorder %s164, %s165
      %p177 = scmp.eq.s32.totalorder %s35, 1
      %p178 = por %p176, %p177
      %p180 = scmp.ne.s32.totalorder %s165, %s179
      %p181 = scmp.eq.s32.totalorder %s35, 0
      %p182 = por %p180, %p181
      %s183 = ssub.s32 %s29, %s36
      %p184 = scmp.eq.s32.totalorder %s183, 0
      %s186 = sadd.s32 %s185, 1
      %s187 = scalar_select %p184, %s185, %s186
      %p190 = pneg %p184
      %p191 = scmp.eq.s32.totalorder %s29, 1
      %p192 = por %p190, %p191
      %p193 = scmp.ne.s32.totalorder %s185, %s188
      %p194 = scmp.eq.s32.totalorder %s29, 0
      %p195 = por %p193, %p194
      %p196 = scmp.ne.s32.totalorder %s185, %s188
      %p197 = scmp.eq.s32.totalorder %s34, 1
      %p198 = por %p196, %p197
      %p199 = scmp.ne.s32.totalorder %s188, %s189
      %p200 = scmp.eq.s32.totalorder %s34, 0
      %p201 = por %p199, %p200
      %p202 = scmp.ne.s32.totalorder %s188, %s189
      %p203 = scmp.eq.s32.totalorder %s35, 1
      %p204 = por %p202, %p203
      %p206 = scmp.ne.s32.totalorder %s189, %s205
      %p207 = scmp.eq.s32.totalorder %s35, 0
      %p208 = por %p206, %p207
      %s209 = ssub.s32 %s29, %s36
      %p210 = scmp.eq.s32.totalorder %s209, 0
      %s212 = sadd.s32 %s211, 1
      %s213 = scalar_select %p210, %s211, %s212
      %p216 = pneg %p210
      %p217 = scmp.eq.s32.totalorder %s29, 1
      %p218 = por %p216, %p217
      %p219 = scmp.ne.s32.totalorder %s211, %s214
      %p220 = scmp.eq.s32.totalorder %s29, 0
      %p221 = por %p219, %p220
      %p222 = scmp.ne.s32.totalorder %s211, %s214
      %p223 = scmp.eq.s32.totalorder %s34, 1
      %p224 = por %p222, %p223
      %p225 = scmp.ne.s32.totalorder %s214, %s215
      %p226 = scmp.eq.s32.totalorder %s34, 0
      %p227 = por %p225, %p226
      %p228 = scmp.ne.s32.totalorder %s214, %s215
      %p229 = scmp.eq.s32.totalorder %s35, 1
      %p230 = por %p228, %p229
      %p232 = scmp.ne.s32.totalorder %s215, %s231
      %p233 = scmp.eq.s32.totalorder %s35, 0
      %p234 = por %p232, %p233
      %p235 = scmp.le.s32.totalorder 1, %s29
      %p236 = scmp.lt.s32.totalorder %s29, 3
      %p237 = pnand %p235, %p236
      %p238 = pneg %p237
      // Predicated region
      $region9: #{tree_lstm.1} parent=5 // pred_check
        _
      $region10: #{tree_lstm.1} parent=5 // pred_check_branch
        %240 = sbr.rel (%p237) target = $region12
      $region11: #{tree_lstm.1} parent=5 // pred_region
        %s241 = ssub.s32 %s29, 1
        // Predicated region
        $region13: #{tree_lstm.1} parent=11 // pred_check
          %p242 = pneg %p154
        $region14: #{tree_lstm.1} parent=11 // pred_check_branch
          %244 = sbr.rel (%p242) target = $region16
        $region15: #{tree_lstm.1} parent=11 // pred_region
          %s246 = ssub.s32 10240, 10240
          %247 = vsyncadd [#allocation9], %s246
          %s248 = sshll.u32 [#allocation10], 4
          %s249 = int_to_ptr.vmem [resolvable:$true] %s248
          %254 = dma.hbm_to_vmem [thread:$0]  %s4, 10240, %s249, [#allocation9], 320, 320, 20
        $region16: #{tree_lstm.1} parent=11 // pred_fallthru
          _
        // Predicated region
        $region17: #{tree_lstm.1} parent=11 // pred_check
          %p255 = pneg %p175
        $region18: #{tree_lstm.1} parent=11 // pred_check_branch
          %257 = sbr.rel (%p255) target = $region20
        $region19: #{tree_lstm.1} parent=11 // pred_region
          _
        $region20: #{tree_lstm.1} parent=11 // pred_fallthru
          _
      $region12: #{tree_lstm.1} parent=5 // pred_fallthru
        _
      %p258 = scmp.lt.s32.totalorder %s29, 2
      // Predicated region
      $region21: #{tree_lstm.1} parent=5 // pred_check
        %p259 = pneg %p258
      $region22: #{tree_lstm.1} parent=5 // pred_check_branch
        %261 = sbr.rel (%p259) target = $region24
      $region23: #{tree_lstm.1} parent=5 // pred_region
        // Predicated region
        $region25: #{tree_lstm.1} parent=23 // pred_check
          %p262 = pneg %p49
        $region26: #{tree_lstm.1} parent=23 // pred_check_branch
          %264 = sbr.rel (%p262) target = $region28
        $region27: #{tree_lstm.1} parent=23 // pred_region
          %s265 = sand.u32 %s39, 1
          %s266 = scalar_lea.sflag [#allocation3], %s265
          %s267 = sand.u32 %s39, 1
          %s268 = smul.addr %s267, 32
          %s269 = scalar_lea.vmem [#allocation2], %s268
          %s270 = smul.u32 4, %s29
          %s272 = ssub.s32 512, 512
          %273 = vsyncadd %s266, %s272
          %s274 = smul.addr %s270, 128
          %s275 = scalar_lea.hbm %s0, %s274
          %s276 = sshll.u32 %s269, 4
          %s277 = int_to_ptr.vmem [resolvable:$true] %s276
          %282 = dma.hbm_to_vmem [thread:$0]  %s275, 512, %s277, %s266, 128, 128, 8
        $region28: #{tree_lstm.1} parent=23 // pred_fallthru
          _
        // Predicated region
        $region29: #{tree_lstm.1} parent=23 // pred_check
          %p283 = pneg %p75
        $region30: #{tree_lstm.1} parent=23 // pred_check_branch
          %285 = sbr.rel (%p283) target = $region32
        $region31: #{tree_lstm.1} parent=23 // pred_region
          %s286 = sand.u32 %s29, 1
          %s287 = scalar_lea.sflag [#allocation6], %s286
          %s288 = sand.u32 %s65, 1
          %s289 = smul.addr %s288, 32
          %s290 = scalar_lea.vmem [#allocation5], %s289
          %s291 = smul.u32 4, %s29
          %s293 = ssub.s32 512, 512
          %294 = vsyncadd %s287, %s293
          %s295 = smul.addr %s291, 128
          %s296 = scalar_lea.hbm %s1, %s295
          %s297 = sshll.u32 %s290, 4
          %s298 = int_to_ptr.vmem [resolvable:$true] %s297
          %303 = dma.hbm_to_vmem [thread:$0]  %s296, 512, %s298, %s287, 128, 128, 8
        $region32: #{tree_lstm.1} parent=23 // pred_fallthru
          _
        // Predicated region
        $region33: #{tree_lstm.1} parent=23 // pred_check
          %p304 = pneg %p101
        $region34: #{tree_lstm.1} parent=23 // pred_check_branch
          %306 = sbr.rel (%p304) target = $region36
        $region35: #{tree_lstm.1} parent=23 // pred_region
          %s307 = sand.u32 %s29, 1
          %s308 = scalar_lea.sflag [#allocation6], %s307
          %s309 = sand.u32 %s91, 1
          %s310 = smul.addr %s309, 32
          %s311 = scalar_lea.vmem [#allocation7], %s310
          %s312 = smul.u32 4, %s29
          %s314 = ssub.s32 512, 512
          %315 = vsyncadd %s308, %s314
          %s316 = smul.addr %s312, 128
          %s317 = scalar_lea.hbm %s2, %s316
          %s318 = sshll.u32 %s311, 4
          %s319 = int_to_ptr.vmem [resolvable:$true] %s318
          %324 = dma.hbm_to_vmem [thread:$0]  %s317, 512, %s319, %s308, 128, 128, 8
        $region36: #{tree_lstm.1} parent=23 // pred_fallthru
          _
        // Predicated region
        $region37: #{tree_lstm.1} parent=23 // pred_check
          %p325 = pneg %p127
        $region38: #{tree_lstm.1} parent=23 // pred_check_branch
          %327 = sbr.rel (%p325) target = $region40
        $region39: #{tree_lstm.1} parent=23 // pred_region
          %s328 = sand.u32 %s29, 1
          %s329 = scalar_lea.sflag [#allocation9], %s328
          %s330 = sand.u32 %s117, 1
          %s331 = smul.addr %s330, 32
          %s332 = scalar_lea.vmem [#allocation8], %s331
          %s333 = smul.u32 4, %s29
          %s335 = ssub.s32 512, 512
          %336 = vsyncadd %s329, %s335
          %s337 = smul.addr %s333, 128
          %s338 = scalar_lea.hbm %s3, %s337
          %s339 = sshll.u32 %s332, 4
          %s340 = int_to_ptr.vmem [resolvable:$true] %s339
          %345 = dma.hbm_to_vmem [thread:$0]  %s338, 512, %s340, %s329, 128, 128, 8
        $region40: #{tree_lstm.1} parent=23 // pred_fallthru
          _
      $region24: #{tree_lstm.1} parent=5 // pred_fallthru
        _
      %p346 = scmp.le.s32.totalorder 1, %s29
      %p347 = scmp.lt.s32.totalorder %s29, 3
      %p348 = pnand %p346, %p347
      %p349 = pneg %p348
      // Predicated region
      $region41: #{tree_lstm.1} parent=5 // pred_check
        _
      $region42: #{tree_lstm.1} parent=5 // pred_check_branch
        %351 = sbr.rel (%p348) target = $region44
      $region43: #{tree_lstm.1} parent=5 // pred_region
        %s352 = ssub.s32 %s29, 1
        %s353 = sand.u32 %s42, 1
        %s354 = scalar_lea.sflag [#allocation3], %s353
        %s355 = sand.u32 %s42, 1
        %s356 = smul.addr %s355, 32
        %s357 = scalar_lea.vmem [#allocation2], %s356
        // Predicated region
        $region45: #{tree_lstm.1} parent=43 // pred_check
          %p358 = pneg %p55
        $region46: #{tree_lstm.1} parent=43 // pred_check_branch
          %360 = sbr.rel (%p358) target = $region48
        $region47: #{tree_lstm.1} parent=43 // pred_region
          %361 = dma.done %s354, 512
        $region48: #{tree_lstm.1} parent=43 // pred_fallthru
          _
        %s362 = sand.u32 %s34, 1
        %s363 = scalar_lea.sflag [#allocation6], %s362
        %s364 = sand.u32 %s68, 1
        %s365 = smul.addr %s364, 32
        %s366 = scalar_lea.vmem [#allocation5], %s365
        // Predicated region
        $region49: #{tree_lstm.1} parent=43 // pred_check
          %p367 = pneg %p81
        $region50: #{tree_lstm.1} parent=43 // pred_check_branch
          %369 = sbr.rel (%p367) target = $region52
        $region51: #{tree_lstm.1} parent=43 // pred_region
          %370 = dma.done %s363, 512
        $region52: #{tree_lstm.1} parent=43 // pred_fallthru
          _
        %s371 = sand.u32 %s34, 1
        %s372 = scalar_lea.sflag [#allocation6], %s371
        %s373 = sand.u32 %s94, 1
        %s374 = smul.addr %s373, 32
        %s375 = scalar_lea.vmem [#allocation7], %s374
        // Predicated region
        $region53: #{tree_lstm.1} parent=43 // pred_check
          %p376 = pneg %p107
        $region54: #{tree_lstm.1} parent=43 // pred_check_branch
          %378 = sbr.rel (%p376) target = $region56
        $region55: #{tree_lstm.1} parent=43 // pred_region
          %379 = dma.done %s372, 512
        $region56: #{tree_lstm.1} parent=43 // pred_fallthru
          _
        %s380 = sand.u32 %s34, 1
        %s381 = scalar_lea.sflag [#allocation9], %s380
        %s382 = sand.u32 %s120, 1
        %s383 = smul.addr %s382, 32
        %s384 = scalar_lea.vmem [#allocation8], %s383
        // Predicated region
        $region57: #{tree_lstm.1} parent=43 // pred_check
          %p385 = pneg %p133
        $region58: #{tree_lstm.1} parent=43 // pred_check_branch
          %387 = sbr.rel (%p385) target = $region60
        $region59: #{tree_lstm.1} parent=43 // pred_region
          %388 = dma.done %s381, 512
        $region60: #{tree_lstm.1} parent=43 // pred_fallthru
          _
        // Predicated region
        $region61: #{tree_lstm.1} parent=43 // pred_check
          %p389 = pneg %p154
        $region62: #{tree_lstm.1} parent=43 // pred_check_branch
          %391 = sbr.rel (%p389) target = $region64
        $region63: #{tree_lstm.1} parent=43 // pred_region
          %392 = dma.done [#allocation9], 10240
        $region64: #{tree_lstm.1} parent=43 // pred_fallthru
          _
        %s393 = sand.u32 %s42, 1
        %s394 = scalar_lea.sflag [#allocation3], %s393
        %s395 = sand.u32 %s42, 1
        %s396 = smul.addr %s395, 32
        %s397 = scalar_lea.vmem [#allocation2], %s396
        %p398 = pneg %p55
        %p399 = pneg %p52
        %s400 = sand.u32 %s34, 1
        %s401 = scalar_lea.sflag [#allocation6], %s400
        %s402 = sand.u32 %s68, 1
        %s403 = smul.addr %s402, 32
        %s404 = scalar_lea.vmem [#allocation5], %s403
        %p405 = pneg %p81
        %p406 = pneg %p78
        %s407 = sand.u32 %s34, 1
        %s408 = scalar_lea.sflag [#allocation6], %s407
        %s409 = sand.u32 %s94, 1
        %s410 = smul.addr %s409, 32
        %s411 = scalar_lea.vmem [#allocation7], %s410
        %p412 = pneg %p107
        %p413 = pneg %p104
        %s414 = sand.u32 %s34, 1
        %s415 = scalar_lea.sflag [#allocation9], %s414
        %s416 = sand.u32 %s120, 1
        %s417 = smul.addr %s416, 32
        %s418 = scalar_lea.vmem [#allocation8], %s417
        %p419 = pneg %p133
        %p420 = pneg %p130
        %p421 = pneg %p154
        %p422 = pneg %p151
        %p423 = pneg %p175
        %p424 = pneg %p172
        %p425 = pneg %p201
        %p426 = pneg %p198
        %s427 = sand.u32 %s188, 1
        %s428 = scalar_lea.sflag [#allocation4], %s427
        %s429 = sand.u32 %s188, 1
        %s430 = smul.addr %s429, 32
        %s431 = scalar_lea.vmem [#allocation11], %s430
        %p432 = pneg %p227
        %p433 = pneg %p224
        %s434 = sand.u32 %s214, 1
        %s435 = scalar_lea.sflag [#allocation13], %s434
        %s436 = sand.u32 %s214, 1
        %s437 = smul.addr %s436, 32
        %s438 = scalar_lea.vmem [#allocation12], %s437
        %s439 = smul.u32 4, %s34
        %s440 = smul.u32 4, %s34
        %s441 = smul.u32 4, %s34
        %s442 = smul.u32 4, %s34
        %s443 = smul.u32 4, %s34
        %s444 = smul.u32 4, %s34
        %v446 = vld [vmem:[%s357] sm:$0xff]
        %v447 = vld [vmem:[%s357 + $0x8] sm:$0xff]
        %v448 = vld [vmem:[%s357 + $0x10] sm:$0xff]
        %v449 = vld [vmem:[%s357 + $0x18] sm:$0xff]
        %v450 = vpack.c.bf16 %v447, %v446
        %v451 = vpack.c.bf16 %v449, %v448
        %v452 = vld [vmem:[%s366] sm:$0xff]
        %v453 = vld [vmem:[%s366 + $0x8] sm:$0xff]
        %v454 = vld [vmem:[%s366 + $0x10] sm:$0xff]
        %v455 = vld [vmem:[%s366 + $0x18] sm:$0xff]
        %v456 = vpack.c.bf16 %v453, %v452
        %v457 = vpack.c.bf16 %v455, %v454
        %v458 = vld [vmem:[#allocation10] sm:$0xff]
        %v459 = vld [vmem:[#allocation10 + $0x8] sm:$0xff]
        %v460 = vld [vmem:[#allocation10 + $0x10] sm:$0xf]
        %v461 = vld [vmem:[#allocation10 + $0x14] sm:$0xff]
        %v462 = vld [vmem:[#allocation10 + $0x1c] sm:$0xff]
        %v463 = vld [vmem:[#allocation10 + $0x24] sm:$0xf]
        %v464 = vld [vmem:[#allocation10 + $0x28] sm:$0xff]
        %v465 = vld [vmem:[#allocation10 + $0x30] sm:$0xff]
        %v466 = vld [vmem:[#allocation10 + $0x38] sm:$0xf]
        %v467 = vld [vmem:[#allocation10 + $0x3c] sm:$0xff]
        %v468 = vld [vmem:[#allocation10 + $0x44] sm:$0xff]
        %v469 = vld [vmem:[#allocation10 + $0x4c] sm:$0xf]
        %v470 = vld [vmem:[#allocation10 + $0x50] sm:$0xff]
        %v471 = vld [vmem:[#allocation10 + $0x58] sm:$0xff]
        %v472 = vld [vmem:[#allocation10 + $0x60] sm:$0xf]
        %v473 = vld [vmem:[#allocation10 + $0x64] sm:$0xff]
        %v474 = vld [vmem:[#allocation10 + $0x6c] sm:$0xff]
        %v475 = vld [vmem:[#allocation10 + $0x74] sm:$0xf]
        %v476 = vld [vmem:[#allocation10 + $0x78] sm:$0xff]
        %v477 = vld [vmem:[#allocation10 + $0x80] sm:$0xff]
        %v478 = vld [vmem:[#allocation10 + $0x88] sm:$0xf]
        %v479 = vld [vmem:[#allocation10 + $0x8c] sm:$0xff]
        %v480 = vld [vmem:[#allocation10 + $0x94] sm:$0xff]
        %v481 = vld [vmem:[#allocation10 + $0x9c] sm:$0xf]
        %v482 = vld [vmem:[#allocation10 + $0xa0] sm:$0xff]
        %v483 = vld [vmem:[#allocation10 + $0xa8] sm:$0xff]
        %v484 = vld [vmem:[#allocation10 + $0xb0] sm:$0xf]
        %v485 = vld [vmem:[#allocation10 + $0xb4] sm:$0xff]
        %v486 = vld [vmem:[#allocation10 + $0xbc] sm:$0xff]
        %v487 = vld [vmem:[#allocation10 + $0xc4] sm:$0xf]
        %v488 = vld [vmem:[#allocation10 + $0xc8] sm:$0xff]
        %v489 = vld [vmem:[#allocation10 + $0xd0] sm:$0xff]
        %v490 = vld [vmem:[#allocation10 + $0xd8] sm:$0xf]
        %v491 = vld [vmem:[#allocation10 + $0xdc] sm:$0xff]
        %v492 = vld [vmem:[#allocation10 + $0xe4] sm:$0xff]
        %v493 = vld [vmem:[#allocation10 + $0xec] sm:$0xf]
        %v494 = vld [vmem:[#allocation10 + $0xf0] sm:$0xff]
        %v495 = vld [vmem:[#allocation10 + $0xf8] sm:$0xff]
        %v496 = vld [vmem:[#allocation10 + $0x100] sm:$0xf]
        %v497 = vld [vmem:[#allocation10 + $0x104] sm:$0xff]
        %v498 = vld [vmem:[#allocation10 + $0x10c] sm:$0xff]
        %v499 = vld [vmem:[#allocation10 + $0x114] sm:$0xf]
        %v500 = vld [vmem:[#allocation10 + $0x118] sm:$0xff]
        %v501 = vld [vmem:[#allocation10 + $0x120] sm:$0xff]
        %v502 = vld [vmem:[#allocation10 + $0x128] sm:$0xf]
        %v503 = vld [vmem:[#allocation10 + $0x12c] sm:$0xff]
        %v504 = vld [vmem:[#allocation10 + $0x134] sm:$0xff]
        %v505 = vld [vmem:[#allocation10 + $0x13c] sm:$0xf]
        %v506 = vld [vmem:[#allocation10 + $0x140] sm:$0xff]
        %v507 = vld [vmem:[#allocation10 + $0x148] sm:$0xff]
        %v508 = vld [vmem:[#allocation10 + $0x150] sm:$0xf]
        %v509 = vld [vmem:[#allocation10 + $0x154] sm:$0xff]
        %v510 = vld [vmem:[#allocation10 + $0x15c] sm:$0xff]
        %v511 = vld [vmem:[#allocation10 + $0x164] sm:$0xf]
        %v512 = vld [vmem:[#allocation10 + $0x168] sm:$0xff]
        %v513 = vld [vmem:[#allocation10 + $0x170] sm:$0xff]
        %v514 = vld [vmem:[#allocation10 + $0x178] sm:$0xf]
        %v515 = vld [vmem:[#allocation10 + $0x17c] sm:$0xff]
        %v516 = vld [vmem:[#allocation10 + $0x184] sm:$0xff]
        %v517 = vld [vmem:[#allocation10 + $0x18c] sm:$0xf]
        %v518 = vld [vmem:[#allocation10 + $0x190] sm:$0xff]
        %v519 = vld [vmem:[#allocation10 + $0x198] sm:$0xff]
        %v520 = vld [vmem:[#allocation10 + $0x1a0] sm:$0xf]
        %v521 = vld [vmem:[#allocation10 + $0x1a4] sm:$0xff]
        %v522 = vld [vmem:[#allocation10 + $0x1ac] sm:$0xff]
        %v523 = vld [vmem:[#allocation10 + $0x1b4] sm:$0xf]
        %v524 = vld [vmem:[#allocation10 + $0x1b8] sm:$0xff]
        %v525 = vld [vmem:[#allocation10 + $0x1c0] sm:$0xff]
        %v526 = vld [vmem:[#allocation10 + $0x1c8] sm:$0xf]
        %v527 = vld [vmem:[#allocation10 + $0x1cc] sm:$0xff]
        %v528 = vld [vmem:[#allocation10 + $0x1d4] sm:$0xff]
        %v529 = vld [vmem:[#allocation10 + $0x1dc] sm:$0xf]
        %v530 = vld [vmem:[#allocation10 + $0x1e0] sm:$0xff]
        %v531 = vld [vmem:[#allocation10 + $0x1e8] sm:$0xff]
        %v532 = vld [vmem:[#allocation10 + $0x1f0] sm:$0xf]
        %v533 = vld [vmem:[#allocation10 + $0x1f4] sm:$0xff]
        %v534 = vld [vmem:[#allocation10 + $0x1fc] sm:$0xff]
        %v535 = vld [vmem:[#allocation10 + $0x204] sm:$0xf]
        %v536 = vld [vmem:[#allocation10 + $0x208] sm:$0xff]
        %v537 = vld [vmem:[#allocation10 + $0x210] sm:$0xff]
        %v538 = vld [vmem:[#allocation10 + $0x218] sm:$0xf]
        %v539 = vld [vmem:[#allocation10 + $0x21c] sm:$0xff]
        %v540 = vld [vmem:[#allocation10 + $0x224] sm:$0xff]
        %v541 = vld [vmem:[#allocation10 + $0x22c] sm:$0xf]
        %v542 = vld [vmem:[#allocation10 + $0x230] sm:$0xff]
        %v543 = vld [vmem:[#allocation10 + $0x238] sm:$0xff]
        %v544 = vld [vmem:[#allocation10 + $0x240] sm:$0xf]
        %v545 = vld [vmem:[#allocation10 + $0x244] sm:$0xff]
        %v546 = vld [vmem:[#allocation10 + $0x24c] sm:$0xff]
        %v547 = vld [vmem:[#allocation10 + $0x254] sm:$0xf]
        %v548 = vld [vmem:[#allocation10 + $0x258] sm:$0xff]
        %v549 = vld [vmem:[#allocation10 + $0x260] sm:$0xff]
        %v550 = vld [vmem:[#allocation10 + $0x268] sm:$0xf]
        %v551 = vld [vmem:[#allocation10 + $0x26c] sm:$0xff]
        %v552 = vld [vmem:[#allocation10 + $0x274] sm:$0xff]
        %v553 = vld [vmem:[#allocation10 + $0x27c] sm:$0xf]
        %v602 = vunpack.c.l.b16 %v506
        %v603 = vunpack.c.h.b16 %v506
        %v604 = vunpack.c.l.b16 %v507
        %v605 = vunpack.c.h.b16 %v507
        %v606 = vunpack.c.l.b16 %v508
        %v607 = vunpack.c.l.b16 %v509
        %v608 = vunpack.c.h.b16 %v509
        %v609 = vunpack.c.l.b16 %v510
        %v610 = vunpack.c.h.b16 %v510
        %v611 = vunpack.c.l.b16 %v511
        %v612 = vunpack.c.l.b16 %v512
        %v613 = vunpack.c.h.b16 %v512
        %v614 = vunpack.c.l.b16 %v513
        %v615 = vunpack.c.h.b16 %v513
        %v616 = vunpack.c.l.b16 %v514
        %v617 = vunpack.c.l.b16 %v515
        %v618 = vunpack.c.h.b16 %v515
        %v619 = vunpack.c.l.b16 %v516
        %v620 = vunpack.c.h.b16 %v516
        %v621 = vunpack.c.l.b16 %v517
        %v622 = vunpack.c.l.b16 %v518
        %v623 = vunpack.c.h.b16 %v518
        %v624 = vunpack.c.l.b16 %v519
        %v625 = vunpack.c.h.b16 %v519
        %v626 = vunpack.c.l.b16 %v520
        %v627 = vunpack.c.l.b16 %v521
        %v628 = vunpack.c.h.b16 %v521
        %v629 = vunpack.c.l.b16 %v522
        %v630 = vunpack.c.h.b16 %v522
        %v631 = vunpack.c.l.b16 %v523
        %v632 = vunpack.c.l.b16 %v524
        %v633 = vunpack.c.h.b16 %v524
        %v634 = vunpack.c.l.b16 %v525
        %v635 = vunpack.c.h.b16 %v525
        %v636 = vunpack.c.l.b16 %v526
        %v637 = vunpack.c.l.b16 %v527
        %v638 = vunpack.c.h.b16 %v527
        %v639 = vunpack.c.l.b16 %v528
        %v640 = vunpack.c.h.b16 %v528
        %v641 = vunpack.c.l.b16 %v529
        %v642 = vunpack.c.l.b16 %v530
        %v643 = vunpack.c.h.b16 %v530
        %v644 = vunpack.c.l.b16 %v531
        %v645 = vunpack.c.h.b16 %v531
        %v646 = vunpack.c.l.b16 %v532
        %v647 = vunpack.c.l.b16 %v533
        %v648 = vunpack.c.h.b16 %v533
        %v649 = vunpack.c.l.b16 %v534
        %v650 = vunpack.c.h.b16 %v534
        %v651 = vunpack.c.l.b16 %v535
        %v652 = vunpack.c.l.b16 %v536
        %v653 = vunpack.c.h.b16 %v536
        %v654 = vunpack.c.l.b16 %v537
        %v655 = vunpack.c.h.b16 %v537
        %v656 = vunpack.c.l.b16 %v538
        %v657 = vunpack.c.l.b16 %v539
        %v658 = vunpack.c.h.b16 %v539
        %v659 = vunpack.c.l.b16 %v540
        %v660 = vunpack.c.h.b16 %v540
        %v661 = vunpack.c.l.b16 %v541
        %v662 = vunpack.c.l.b16 %v542
        %v663 = vunpack.c.h.b16 %v542
        %v664 = vunpack.c.l.b16 %v543
        %v665 = vunpack.c.h.b16 %v543
        %v666 = vunpack.c.l.b16 %v544
        %v667 = vunpack.c.l.b16 %v545
        %v668 = vunpack.c.h.b16 %v545
        %v669 = vunpack.c.l.b16 %v546
        %v670 = vunpack.c.h.b16 %v546
        %v671 = vunpack.c.l.b16 %v547
        %v672 = vunpack.c.l.b16 %v548
        %v673 = vunpack.c.h.b16 %v548
        %v674 = vunpack.c.l.b16 %v549
        %v675 = vunpack.c.h.b16 %v549
        %v676 = vunpack.c.l.b16 %v550
        %v677 = vunpack.c.l.b16 %v551
        %v678 = vunpack.c.h.b16 %v551
        %v679 = vunpack.c.l.b16 %v552
        %v680 = vunpack.c.h.b16 %v552
        %v681 = vunpack.c.l.b16 %v553
        %v682 = vpack.c.b16 %v607, %v602
        %v683 = vpack.c.b16 %v608, %v603
        %v684 = vpack.c.b16 %v609, %v604
        %v685 = vpack.c.b16 %v610, %v605
        %v686 = vpack.c.b16 %v611, %v606
        %v687 = vpack.c.b16 %v617, %v612
        %v688 = vpack.c.b16 %v618, %v613
        %v689 = vpack.c.b16 %v619, %v614
        %v690 = vpack.c.b16 %v620, %v615
        %v691 = vpack.c.b16 %v621, %v616
        %v692 = vpack.c.b16 %v627, %v622
        %v693 = vpack.c.b16 %v628, %v623
        %v694 = vpack.c.b16 %v629, %v624
        %v695 = vpack.c.b16 %v630, %v625
        %v696 = vpack.c.b16 %v631, %v626
        %v697 = vpack.c.b16 %v637, %v632
        %v698 = vpack.c.b16 %v638, %v633
        %v699 = vpack.c.b16 %v639, %v634
        %v700 = vpack.c.b16 %v640, %v635
        %v701 = vpack.c.b16 %v641, %v636
        %v702 = vpack.c.b16 %v647, %v642
        %v703 = vpack.c.b16 %v648, %v643
        %v704 = vpack.c.b16 %v649, %v644
        %v705 = vpack.c.b16 %v650, %v645
        %v706 = vpack.c.b16 %v651, %v646
        %v707 = vpack.c.b16 %v657, %v652
        %v708 = vpack.c.b16 %v658, %v653
        %v709 = vpack.c.b16 %v659, %v654
        %v710 = vpack.c.b16 %v660, %v655
        %v711 = vpack.c.b16 %v661, %v656
        %v712 = vpack.c.b16 %v667, %v662
        %v713 = vpack.c.b16 %v668, %v663
        %v714 = vpack.c.b16 %v669, %v664
        %v715 = vpack.c.b16 %v670, %v665
        %v716 = vpack.c.b16 %v671, %v666
        %v717 = vpack.c.b16 %v677, %v672
        %v718 = vpack.c.b16 %v678, %v673
        %v719 = vpack.c.b16 %v679, %v674
        %v720 = vpack.c.b16 %v680, %v675
        %v721 = vpack.c.b16 %v681, %v676
        %762 = vmatprep.subr.bf16.mxu0 %v683
        %763 = vmatpush1.bf16.msra.mxu0 %v682
        %764 = vmatprep.subr.bf16.mxu0 %v688
        %765 = vmatpush1.bf16.msra.mxu0 %v687
        %766 = vmatprep.subr.bf16.mxu0 %v693
        %767 = vmatpush1.bf16.msra.mxu0 %v692
        %768 = vmatprep.subr.bf16.mxu0 %v698
        %769 = vmatpush1.bf16.msra.mxu0 %v697
        %770 = vmatprep.subr.bf16.mxu0 %v703
        %771 = vmatpush1.bf16.msra.mxu0 %v702
        %772 = vmatprep.subr.bf16.mxu0 %v708
        %773 = vmatpush1.bf16.msra.mxu0 %v707
        %774 = vmatprep.subr.bf16.mxu0 %v713
        %775 = vmatpush1.bf16.msra.mxu0 %v712
        %776 = vmatprep.subr.bf16.mxu0 %v718
        %777 = vmatpush1.bf16.msra.mxu0 %v717
        %778 = vmatprep.subr.bf16.mxu0 0
        %779 = vmatpush1.bf16.msra.mxu0 0
        %780 = vmatprep.subr.bf16.mxu0 0
        %781 = vmatpush1.bf16.msra.mxu0 0
        %782 = vmatprep.subr.bf16.mxu0 0
        %783 = vmatpush1.bf16.msra.mxu0 0
        %784 = vmatprep.subr.bf16.mxu0 0
        %785 = vmatpush1.bf16.msra.mxu0 0
        %786 = vmatprep.subr.bf16.mxu0 0
        %787 = vmatpush1.bf16.msra.mxu0 0
        %788 = vmatprep.subr.bf16.mxu0 0
        %789 = vmatpush1.bf16.msra.mxu0 0
        %790 = vmatprep.subr.bf16.mxu0 0
        %791 = vmatpush1.bf16.msra.mxu0 0
        %792 = vmatprep.subr.bf16.mxu0 0
        %793 = vmatpush1.bf16.msra.mxu0 0
        %794 = vmatprep.mubr.bf16.mxu0 0
        %795 = vmatmul.mubr.bf16.gmra.mrb[0].mxu0 %v456
        %v796 = vpop.f32.mrb[0].mxu0
        %v797 = vadd.f32 0.0, %v796
        %v798 = vpop.f32.mrb[0].mxu0
        %v799 = vadd.f32 0.0, %v798
        %v800 = vpop.f32.mrb[0].mxu0
        %v801 = vadd.f32 0.0, %v800
        %v802 = vpop.f32.mrb[0].mxu0
        %v803 = vadd.f32 0.0, %v802
        %804 = vmatprep.mubr.bf16.mxu0 0
        %805 = vmatmul.mubr.bf16.gmra.mrb[0].mxu0 %v457
        %v806 = vpop.f32.mrb[0].mxu0
        %v807 = vadd.f32 0.0, %v806
        %v808 = vpop.f32.mrb[0].mxu0
        %v809 = vadd.f32 0.0, %v808
        %v810 = vpop.f32.mrb[0].mxu0
        %v811 = vadd.f32 0.0, %v810
        %v812 = vpop.f32.mrb[0].mxu0
        %v813 = vadd.f32 0.0, %v812
        %814 = vdwg.mxu0
        %815 = vmatprep.subr.bf16.mxu0 %v685
        %816 = vmatpush1.bf16.msra.mxu0 %v684
        %817 = vmatprep.subr.bf16.mxu0 %v690
        %818 = vmatpush1.bf16.msra.mxu0 %v689
        %819 = vmatprep.subr.bf16.mxu0 %v695
        %820 = vmatpush1.bf16.msra.mxu0 %v694
        %821 = vmatprep.subr.bf16.mxu0 %v700
        %822 = vmatpush1.bf16.msra.mxu0 %v699
        %823 = vmatprep.subr.bf16.mxu0 %v705
        %824 = vmatpush1.bf16.msra.mxu0 %v704
        %825 = vmatprep.subr.bf16.mxu0 %v710
        %826 = vmatpush1.bf16.msra.mxu0 %v709
        %827 = vmatprep.subr.bf16.mxu0 %v715
        %828 = vmatpush1.bf16.msra.mxu0 %v714
        %829 = vmatprep.subr.bf16.mxu0 %v720
        %830 = vmatpush1.bf16.msra.mxu0 %v719
        %831 = vmatprep.subr.bf16.mxu0 0
        %832 = vmatpush1.bf16.msra.mxu0 0
        %833 = vmatprep.subr.bf16.mxu0 0
        %834 = vmatpush1.bf16.msra.mxu0 0
        %835 = vmatprep.subr.bf16.mxu0 0
        %836 = vmatpush1.bf16.msra.mxu0 0
        %837 = vmatprep.subr.bf16.mxu0 0
        %838 = vmatpush1.bf16.msra.mxu0 0
        %839 = vmatprep.subr.bf16.mxu0 0
        %840 = vmatpush1.bf16.msra.mxu0 0
        %841 = vmatprep.subr.bf16.mxu0 0
        %842 = vmatpush1.bf16.msra.mxu0 0
        %843 = vmatprep.subr.bf16.mxu0 0
        %844 = vmatpush1.bf16.msra.mxu0 0
        %845 = vmatprep.subr.bf16.mxu0 0
        %846 = vmatpush1.bf16.msra.mxu0 0
        %847 = vmatprep.mubr.bf16.mxu0 0
        %848 = vmatmul.mubr.bf16.gmra.mrb[0].mxu0 %v456
        %v849 = vpop.f32.mrb[0].mxu0
        %v850 = vadd.f32 0.0, %v849
        %v851 = vpop.f32.mrb[0].mxu0
        %v852 = vadd.f32 0.0, %v851
        %v853 = vpop.f32.mrb[0].mxu0
        %v854 = vadd.f32 0.0, %v853
        %v855 = vpop.f32.mrb[0].mxu0
        %v856 = vadd.f32 0.0, %v855
        %857 = vmatprep.mubr.bf16.mxu0 0
        %858 = vmatmul.mubr.bf16.gmra.mrb[0].mxu0 %v457
        %v859 = vpop.f32.mrb[0].mxu0
        %v860 = vadd.f32 0.0, %v859
        %v861 = vpop.f32.mrb[0].mxu0
        %v862 = vadd.f32 0.0, %v861
        %v863 = vpop.f32.mrb[0].mxu0
        %v864 = vadd.f32 0.0, %v863
        %v865 = vpop.f32.mrb[0].mxu0
        %v866 = vadd.f32 0.0, %v865
        %867 = vdwg.mxu0
        %868 = vmatprep.subr.bf16.mxu0 0
        %869 = vmatpush1.bf16.msra.mxu0 %v686
        %870 = vmatprep.subr.bf16.mxu0 0
        %871 = vmatpush1.bf16.msra.mxu0 %v691
        %872 = vmatprep.subr.bf16.mxu0 0
        %873 = vmatpush1.bf16.msra.mxu0 %v696
        %874 = vmatprep.subr.bf16.mxu0 0
        %875 = vmatpush1.bf16.msra.mxu0 %v701
        %876 = vmatprep.subr.bf16.mxu0 0
        %877 = vmatpush1.bf16.msra.mxu0 %v706
        %878 = vmatprep.subr.bf16.mxu0 0
        %879 = vmatpush1.bf16.msra.mxu0 %v711
        %880 = vmatprep.subr.bf16.mxu0 0
        %881 = vmatpush1.bf16.msra.mxu0 %v716
        %882 = vmatprep.subr.bf16.mxu0 0
        %883 = vmatpush1.bf16.msra.mxu0 %v721
        %884 = vmatprep.subr.bf16.mxu0 0
        %885 = vmatpush1.bf16.msra.mxu0 0
        %886 = vmatprep.subr.bf16.mxu0 0
        %887 = vmatpush1.bf16.msra.mxu0 0
        %888 = vmatprep.subr.bf16.mxu0 0
        %889 = vmatpush1.bf16.msra.mxu0 0
        %890 = vmatprep.subr.bf16.mxu0 0
        %891 = vmatpush1.bf16.msra.mxu0 0
        %892 = vmatprep.subr.bf16.mxu0 0
        %893 = vmatpush1.bf16.msra.mxu0 0
        %894 = vmatprep.subr.bf16.mxu0 0
        %895 = vmatpush1.bf16.msra.mxu0 0
        %896 = vmatprep.subr.bf16.mxu0 0
        %897 = vmatpush1.bf16.msra.mxu0 0
        %898 = vmatprep.subr.bf16.mxu0 0
        %899 = vmatpush1.bf16.msra.mxu0 0
        %900 = vmatprep.mubr.bf16.mxu0 0
        %901 = vmatmul.mubr.bf16.gmra.mrb[0].mxu0 %v456
        %v902 = vpop.f32.mrb[0].mxu0
        %v903 = vadd.f32 0.0, %v902
        %v904 = vpop.f32.mrb[0].mxu0
        %v905 = vpop.f32.mrb[0].mxu0
        %v906 = vadd.f32 0.0, %v905
        %v907 = vpop.f32.mrb[0].mxu0
        %908 = vmatprep.mubr.bf16.mxu0 0
        %909 = vmatmul.mubr.bf16.gmra.mrb[0].mxu0 %v457
        %v910 = vpop.f32.mrb[0].mxu0
        %v911 = vadd.f32 0.0, %v910
        %v912 = vpop.f32.mrb[0].mxu0
        %v913 = vpop.f32.mrb[0].mxu0
        %v914 = vadd.f32 0.0, %v913
        %v915 = vpop.f32.mrb[0].mxu0
        %916 = vdwg.mxu0
        %v965 = vunpack.c.l.b16 %v458
        %v966 = vunpack.c.h.b16 %v458
        %v967 = vunpack.c.l.b16 %v459
        %v968 = vunpack.c.h.b16 %v459
        %v969 = vunpack.c.l.b16 %v460
        %v970 = vunpack.c.l.b16 %v461
        %v971 = vunpack.c.h.b16 %v461
        %v972 = vunpack.c.l.b16 %v462
        %v973 = vunpack.c.h.b16 %v462
        %v974 = vunpack.c.l.b16 %v463
        %v975 = vunpack.c.l.b16 %v464
        %v976 = vunpack.c.h.b16 %v464
        %v977 = vunpack.c.l.b16 %v465
        %v978 = vunpack.c.h.b16 %v465
        %v979 = vunpack.c.l.b16 %v466
        %v980 = vunpack.c.l.b16 %v467
        %v981 = vunpack.c.h.b16 %v467
        %v982 = vunpack.c.l.b16 %v468
        %v983 = vunpack.c.h.b16 %v468
        %v984 = vunpack.c.l.b16 %v469
        %v985 = vunpack.c.l.b16 %v470
        %v986 = vunpack.c.h.b16 %v470
        %v987 = vunpack.c.l.b16 %v471
        %v988 = vunpack.c.h.b16 %v471
        %v989 = vunpack.c.l.b16 %v472
        %v990 = vunpack.c.l.b16 %v473
        %v991 = vunpack.c.h.b16 %v473
        %v992 = vunpack.c.l.b16 %v474
        %v993 = vunpack.c.h.b16 %v474
        %v994 = vunpack.c.l.b16 %v475
        %v995 = vunpack.c.l.b16 %v476
        %v996 = vunpack.c.h.b16 %v476
        %v997 = vunpack.c.l.b16 %v477
        %v998 = vunpack.c.h.b16 %v477
        %v999 = vunpack.c.l.b16 %v478
        %v1000 = vunpack.c.l.b16 %v479
        %v1001 = vunpack.c.h.b16 %v479
        %v1002 = vunpack.c.l.b16 %v480
        %v1003 = vunpack.c.h.b16 %v480
        %v1004 = vunpack.c.l.b16 %v481
        %v1005 = vunpack.c.l.b16 %v482
        %v1006 = vunpack.c.h.b16 %v482
        %v1007 = vunpack.c.l.b16 %v483
        %v1008 = vunpack.c.h.b16 %v483
        %v1009 = vunpack.c.l.b16 %v484
        %v1010 = vunpack.c.l.b16 %v485
        %v1011 = vunpack.c.h.b16 %v485
        %v1012 = vunpack.c.l.b16 %v486
        %v1013 = vunpack.c.h.b16 %v486
        %v1014 = vunpack.c.l.b16 %v487
        %v1015 = vunpack.c.l.b16 %v488
        %v1016 = vunpack.c.h.b16 %v488
        %v1017 = vunpack.c.l.b16 %v489
        %v1018 = vunpack.c.h.b16 %v489
        %v1019 = vunpack.c.l.b16 %v490
        %v1020 = vunpack.c.l.b16 %v491
        %v1021 = vunpack.c.h.b16 %v491
        %v1022 = vunpack.c.l.b16 %v492
        %v1023 = vunpack.c.h.b16 %v492
        %v1024 = vunpack.c.l.b16 %v493
        %v1025 = vunpack.c.l.b16 %v494
        %v1026 = vunpack.c.h.b16 %v494
        %v1027 = vunpack.c.l.b16 %v495
        %v1028 = vunpack.c.h.b16 %v495
        %v1029 = vunpack.c.l.b16 %v496
        %v1030 = vunpack.c.l.b16 %v497
        %v1031 = vunpack.c.h.b16 %v497
        %v1032 = vunpack.c.l.b16 %v498
        %v1033 = vunpack.c.h.b16 %v498
        %v1034 = vunpack.c.l.b16 %v499
        %v1035 = vunpack.c.l.b16 %v500
        %v1036 = vunpack.c.h.b16 %v500
        %v1037 = vunpack.c.l.b16 %v501
        %v1038 = vunpack.c.h.b16 %v501
        %v1039 = vunpack.c.l.b16 %v502
        %v1040 = vunpack.c.l.b16 %v503
        %v1041 = vunpack.c.h.b16 %v503
        %v1042 = vunpack.c.l.b16 %v504
        %v1043 = vunpack.c.h.b16 %v504
        %v1044 = vunpack.c.l.b16 %v505
        %v1045 = vpack.c.b16 %v970, %v965
        %v1046 = vpack.c.b16 %v971, %v966
        %v1047 = vpack.c.b16 %v972, %v967
        %v1048 = vpack.c.b16 %v973, %v968
        %v1049 = vpack.c.b16 %v974, %v969
        %v1050 = vpack.c.b16 %v980, %v975
        %v1051 = vpack.c.b16 %v981, %v976
        %v1052 = vpack.c.b16 %v982, %v977
        %v1053 = vpack.c.b16 %v983, %v978
        %v1054 = vpack.c.b16 %v984, %v979
        %v1055 = vpack.c.b16 %v990, %v985
        %v1056 = vpack.c.b16 %v991, %v986
        %v1057 = vpack.c.b16 %v992, %v987
        %v1058 = vpack.c.b16 %v993, %v988
        %v1059 = vpack.c.b16 %v994, %v989
        %v1060 = vpack.c.b16 %v1000, %v995
        %v1061 = vpack.c.b16 %v1001, %v996
        %v1062 = vpack.c.b16 %v1002, %v997
        %v1063 = vpack.c.b16 %v1003, %v998
        %v1064 = vpack.c.b16 %v1004, %v999
        %v1065 = vpack.c.b16 %v1010, %v1005
        %v1066 = vpack.c.b16 %v1011, %v1006
        %v1067 = vpack.c.b16 %v1012, %v1007
        %v1068 = vpack.c.b16 %v1013, %v1008
        %v1069 = vpack.c.b16 %v1014, %v1009
        %v1070 = vpack.c.b16 %v1020, %v1015
        %v1071 = vpack.c.b16 %v1021, %v1016
        %v1072 = vpack.c.b16 %v1022, %v1017
        %v1073 = vpack.c.b16 %v1023, %v1018
        %v1074 = vpack.c.b16 %v1024, %v1019
        %v1075 = vpack.c.b16 %v1030, %v1025
        %v1076 = vpack.c.b16 %v1031, %v1026
        %v1077 = vpack.c.b16 %v1032, %v1027
        %v1078 = vpack.c.b16 %v1033, %v1028
        %v1079 = vpack.c.b16 %v1034, %v1029
        %v1080 = vpack.c.b16 %v1040, %v1035
        %v1081 = vpack.c.b16 %v1041, %v1036
        %v1082 = vpack.c.b16 %v1042, %v1037
        %v1083 = vpack.c.b16 %v1043, %v1038
        %v1084 = vpack.c.b16 %v1044, %v1039
        %1125 = vmatprep.subr.bf16.mxu0 %v1046
        %1126 = vmatpush1.bf16.msra.mxu0 %v1045
        %1127 = vmatprep.subr.bf16.mxu0 %v1051
        %1128 = vmatpush1.bf16.msra.mxu0 %v1050
        %1129 = vmatprep.subr.bf16.mxu0 %v1056
        %1130 = vmatpush1.bf16.msra.mxu0 %v1055
        %1131 = vmatprep.subr.bf16.mxu0 %v1061
        %1132 = vmatpush1.bf16.msra.mxu0 %v1060
        %1133 = vmatprep.subr.bf16.mxu0 %v1066
        %1134 = vmatpush1.bf16.msra.mxu0 %v1065
        %1135 = vmatprep.subr.bf16.mxu0 %v1071
        %1136 = vmatpush1.bf16.msra.mxu0 %v1070
        %1137 = vmatprep.subr.bf16.mxu0 %v1076
        %1138 = vmatpush1.bf16.msra.mxu0 %v1075
        %1139 = vmatprep.subr.bf16.mxu0 %v1081
        %1140 = vmatpush1.bf16.msra.mxu0 %v1080
        %1141 = vmatprep.subr.bf16.mxu0 0
        %1142 = vmatpush1.bf16.msra.mxu0 0
        %1143 = vmatprep.subr.bf16.mxu0 0
        %1144 = vmatpush1.bf16.msra.mxu0 0
        %1145 = vmatprep.subr.bf16.mxu0 0
        %1146 = vmatpush1.bf16.msra.mxu0 0
        %1147 = vmatprep.subr.bf16.mxu0 0
        %1148 = vmatpush1.bf16.msra.mxu0 0
        %1149 = vmatprep.subr.bf16.mxu0 0
        %1150 = vmatpush1.bf16.msra.mxu0 0
        %1151 = vmatprep.subr.bf16.mxu0 0
        %1152 = vmatpush1.bf16.msra.mxu0 0
        %1153 = vmatprep.subr.bf16.mxu0 0
        %1154 = vmatpush1.bf16.msra.mxu0 0
        %1155 = vmatprep.subr.bf16.mxu0 0
        %1156 = vmatpush1.bf16.msra.mxu0 0
        %1157 = vmatprep.mubr.bf16.mxu0 0
        %1158 = vmatmul.mubr.bf16.gmra.mrb[0].mxu0 %v450
        %v1159 = vpop.f32.mrb[0].mxu0
        %v1160 = vadd.f32 %v797, %v1159
        %v1161 = vpop.f32.mrb[0].mxu0
        %v1162 = vadd.f32 %v799, %v1161
        %v1163 = vpop.f32.mrb[0].mxu0
        %v1164 = vadd.f32 %v801, %v1163
        %v1165 = vpop.f32.mrb[0].mxu0
        %v1166 = vadd.f32 %v803, %v1165
        %1167 = vmatprep.mubr.bf16.mxu0 0
        %1168 = vmatmul.mubr.bf16.gmra.mrb[0].mxu0 %v451
        %v1169 = vpop.f32.mrb[0].mxu0
        %v1170 = vadd.f32 %v807, %v1169
        %v1171 = vpop.f32.mrb[0].mxu0
        %v1172 = vadd.f32 %v809, %v1171
        %v1173 = vpop.f32.mrb[0].mxu0
        %v1174 = vadd.f32 %v811, %v1173
        %v1175 = vpop.f32.mrb[0].mxu0
        %v1176 = vadd.f32 %v813, %v1175
        %1177 = vdwg.mxu0
        %1178 = vmatprep.subr.bf16.mxu0 %v1048
        %1179 = vmatpush1.bf16.msra.mxu0 %v1047
        %1180 = vmatprep.subr.bf16.mxu0 %v1053
        %1181 = vmatpush1.bf16.msra.mxu0 %v1052
        %1182 = vmatprep.subr.bf16.mxu0 %v1058
        %1183 = vmatpush1.bf16.msra.mxu0 %v1057
        %1184 = vmatprep.subr.bf16.mxu0 %v1063
        %1185 = vmatpush1.bf16.msra.mxu0 %v1062
        %1186 = vmatprep.subr.bf16.mxu0 %v1068
        %1187 = vmatpush1.bf16.msra.mxu0 %v1067
        %1188 = vmatprep.subr.bf16.mxu0 %v1073
        %1189 = vmatpush1.bf16.msra.mxu0 %v1072
        %1190 = vmatprep.subr.bf16.mxu0 %v1078
        %1191 = vmatpush1.bf16.msra.mxu0 %v1077
        %1192 = vmatprep.subr.bf16.mxu0 %v1083
        %1193 = vmatpush1.bf16.msra.mxu0 %v1082
        %1194 = vmatprep.subr.bf16.mxu0 0
        %1195 = vmatpush1.bf16.msra.mxu0 0
        %1196 = vmatprep.subr.bf16.mxu0 0
        %1197 = vmatpush1.bf16.msra.mxu0 0
        %1198 = vmatprep.subr.bf16.mxu0 0
        %1199 = vmatpush1.bf16.msra.mxu0 0
        %1200 = vmatprep.subr.bf16.mxu0 0
        %1201 = vmatpush1.bf16.msra.mxu0 0
        %1202 = vmatprep.subr.bf16.mxu0 0
        %1203 = vmatpush1.bf16.msra.mxu0 0
        %1204 = vmatprep.subr.bf16.mxu0 0
        %1205 = vmatpush1.bf16.msra.mxu0 0
        %1206 = vmatprep.subr.bf16.mxu0 0
        %1207 = vmatpush1.bf16.msra.mxu0 0
        %1208 = vmatprep.subr.bf16.mxu0 0
        %1209 = vmatpush1.bf16.msra.mxu0 0
        %1210 = vmatprep.mubr.bf16.mxu0 0
        %1211 = vmatmul.mubr.bf16.gmra.mrb[0].mxu0 %v450
        %v1212 = vpop.f32.mrb[0].mxu0
        %v1213 = vadd.f32 %v850, %v1212
        %v1214 = vpop.f32.mrb[0].mxu0
        %v1215 = vadd.f32 %v852, %v1214
        %v1216 = vpop.f32.mrb[0].mxu0
        %v1217 = vadd.f32 %v854, %v1216
        %v1218 = vpop.f32.mrb[0].mxu0
        %v1219 = vadd.f32 %v856, %v1218
        %1220 = vmatprep.mubr.bf16.mxu0 0
        %1221 = vmatmul.mubr.bf16.gmra.mrb[0].mxu0 %v451
        %v1222 = vpop.f32.mrb[0].mxu0
        %v1223 = vadd.f32 %v860, %v1222
        %v1224 = vpop.f32.mrb[0].mxu0
        %v1225 = vadd.f32 %v862, %v1224
        %v1226 = vpop.f32.mrb[0].mxu0
        %v1227 = vadd.f32 %v864, %v1226
        %v1228 = vpop.f32.mrb[0].mxu0
        %v1229 = vadd.f32 %v866, %v1228
        %1230 = vdwg.mxu0
        %1231 = vmatprep.subr.bf16.mxu0 0
        %1232 = vmatpush1.bf16.msra.mxu0 %v1049
        %1233 = vmatprep.subr.bf16.mxu0 0
        %1234 = vmatpush1.bf16.msra.mxu0 %v1054
        %1235 = vmatprep.subr.bf16.mxu0 0
        %1236 = vmatpush1.bf16.msra.mxu0 %v1059
        %1237 = vmatprep.subr.bf16.mxu0 0
        %1238 = vmatpush1.bf16.msra.mxu0 %v1064
        %1239 = vmatprep.subr.bf16.mxu0 0
        %1240 = vmatpush1.bf16.msra.mxu0 %v1069
        %1241 = vmatprep.subr.bf16.mxu0 0
        %1242 = vmatpush1.bf16.msra.mxu0 %v1074
        %1243 = vmatprep.subr.bf16.mxu0 0
        %1244 = vmatpush1.bf16.msra.mxu0 %v1079
        %1245 = vmatprep.subr.bf16.mxu0 0
        %1246 = vmatpush1.bf16.msra.mxu0 %v1084
        %1247 = vmatprep.subr.bf16.mxu0 0
        %1248 = vmatpush1.bf16.msra.mxu0 0
        %1249 = vmatprep.subr.bf16.mxu0 0
        %1250 = vmatpush1.bf16.msra.mxu0 0
        %1251 = vmatprep.subr.bf16.mxu0 0
        %1252 = vmatpush1.bf16.msra.mxu0 0
        %1253 = vmatprep.subr.bf16.mxu0 0
        %1254 = vmatpush1.bf16.msra.mxu0 0
        %1255 = vmatprep.subr.bf16.mxu0 0
        %1256 = vmatpush1.bf16.msra.mxu0 0
        %1257 = vmatprep.subr.bf16.mxu0 0
        %1258 = vmatpush1.bf16.msra.mxu0 0
        %1259 = vmatprep.subr.bf16.mxu0 0
        %1260 = vmatpush1.bf16.msra.mxu0 0
        %1261 = vmatprep.subr.bf16.mxu0 0
        %1262 = vmatpush1.bf16.msra.mxu0 0
        %1263 = vmatprep.mubr.bf16.mxu0 0
        %1264 = vmatmul.mubr.bf16.gmra.mrb[0].mxu0 %v450
        %v1265 = vpop.f32.mrb[0].mxu0
        %v1266 = vadd.f32 %v903, %v1265
        %v1267 = vpop.f32.mrb[0].mxu0
        %v1268 = vpop.f32.mrb[0].mxu0
        %v1269 = vadd.f32 %v906, %v1268
        %v1270 = vpop.f32.mrb[0].mxu0
        %1271 = vmatprep.mubr.bf16.mxu0 0
        %1272 = vmatmul.mubr.bf16.gmra.mrb[0].mxu0 %v451
        %v1273 = vpop.f32.mrb[0].mxu0
        %v1274 = vadd.f32 %v911, %v1273
        %v1275 = vpop.f32.mrb[0].mxu0
        %v1276 = vpop.f32.mrb[0].mxu0
        %v1277 = vadd.f32 %v914, %v1276
        %v1278 = vpop.f32.mrb[0].mxu0
        %1279 = vdwg.mxu0
        %v1280 = vld [vmem:[%s5] sm:$0x1f]
        %v1282 = vlaneseq
        %v1283 = vshrl.u32 %v1282, 7
        %v1284 = vsub.s32 0, %v1283
        %v1285 = vrot.slane %v1280, %v1284
        %v1286 = vlaneseq
        %v1287 = vshrl.u32 %v1286, 7
        %v1288 = vsub.s32 1, %v1287
        %v1289 = vrot.slane %v1280, %v1288
        %v1290 = vlaneseq
        %v1291 = vshrl.u32 %v1290, 7
        %v1292 = vsub.s32 2, %v1291
        %v1293 = vrot.slane %v1280, %v1292
        %v1294 = vlaneseq
        %v1295 = vshrl.u32 %v1294, 7
        %v1296 = vsub.s32 3, %v1295
        %v1297 = vrot.slane %v1280, %v1296
        %v1298 = vlaneseq
        %v1299 = vshrl.u32 %v1298, 7
        %v1300 = vsub.s32 4, %v1299
        %v1301 = vrot.slane %v1280, %v1300
        %v1307 = vadd.f32 %v1160, %v1285
        %v1308 = vadd.f32 %v1162, %v1289
        %v1309 = vadd.f32 %v1213, %v1293
        %v1310 = vadd.f32 %v1215, %v1297
        %v1311 = vadd.f32 %v1266, %v1301
        %v1312 = vadd.f32 %v1164, %v1285
        %v1313 = vadd.f32 %v1166, %v1289
        %v1314 = vadd.f32 %v1217, %v1293
        %v1315 = vadd.f32 %v1219, %v1297
        %v1316 = vadd.f32 %v1269, %v1301
        %v1317 = vadd.f32 %v1170, %v1285
        %v1318 = vadd.f32 %v1172, %v1289
        %v1319 = vadd.f32 %v1223, %v1293
        %v1320 = vadd.f32 %v1225, %v1297
        %v1321 = vadd.f32 %v1274, %v1301
        %v1322 = vadd.f32 %v1174, %v1285
        %v1323 = vadd.f32 %v1176, %v1289
        %v1324 = vadd.f32 %v1227, %v1293
        %v1325 = vadd.f32 %v1229, %v1297
        %v1326 = vadd.f32 %v1277, %v1301
        %v1327 = vld [vmem:[%s375] sm:$0xff]
        %v1328 = vld [vmem:[%s375 + $0x8] sm:$0xff]
        %v1329 = vld [vmem:[%s375 + $0x10] sm:$0xff]
        %v1330 = vld [vmem:[%s375 + $0x18] sm:$0xff]
        %v1331 = vld [vmem:[%s384] sm:$0xff]
        %v1332 = vld [vmem:[%s384 + $0x8] sm:$0xff]
        %v1333 = vld [vmem:[%s384 + $0x10] sm:$0xff]
        %v1334 = vld [vmem:[%s384 + $0x18] sm:$0xff]
        %v1335 = vtanh.pop %v1307
        %v1336 = vtanh.pop %v1312
        %v1337 = vtanh.pop %v1317
        %v1338 = vtanh.pop %v1322
        %v1339 = vmul.f32 %v1308, 0.5
        %v1340 = vmul.f32 %v1313, 0.5
        %v1341 = vmul.f32 %v1318, 0.5
        %v1342 = vmul.f32 %v1323, 0.5
        %v1343 = vtanh.pop %v1339
        %v1344 = vtanh.pop %v1340
        %v1345 = vtanh.pop %v1341
        %v1346 = vtanh.pop %v1342
        %v1347 = vadd.f32 %v1343, 1.0
        %v1348 = vadd.f32 %v1344, 1.0
        %v1349 = vadd.f32 %v1345, 1.0
        %v1350 = vadd.f32 %v1346, 1.0
        %v1351 = vmul.f32 %v1347, 0.5
        %v1352 = vmul.f32 %v1348, 0.5
        %v1353 = vmul.f32 %v1349, 0.5
        %v1354 = vmul.f32 %v1350, 0.5
        %v1355 = vmul.f32 %v1335, %v1351
        %v1356 = vmul.f32 %v1336, %v1352
        %v1357 = vmul.f32 %v1337, %v1353
        %v1358 = vmul.f32 %v1338, %v1354
        %v1359 = vmul.f32 %v1309, 0.5
        %v1360 = vmul.f32 %v1314, 0.5
        %v1361 = vmul.f32 %v1319, 0.5
        %v1362 = vmul.f32 %v1324, 0.5
        %v1363 = vtanh.pop %v1359
        %v1364 = vtanh.pop %v1360
        %v1365 = vtanh.pop %v1361
        %v1366 = vtanh.pop %v1362
        %v1367 = vadd.f32 %v1363, 1.0
        %v1368 = vadd.f32 %v1364, 1.0
        %v1369 = vadd.f32 %v1365, 1.0
        %v1370 = vadd.f32 %v1366, 1.0
        %v1371 = vmul.f32 %v1367, 0.5
        %v1372 = vmul.f32 %v1368, 0.5
        %v1373 = vmul.f32 %v1369, 0.5
        %v1374 = vmul.f32 %v1370, 0.5
        %v1375 = vmul.f32 %v1371, %v1327
        %v1376 = vmul.f32 %v1372, %v1328
        %v1377 = vmul.f32 %v1373, %v1329
        %v1378 = vmul.f32 %v1374, %v1330
        %v1379 = vadd.f32 %v1355, %v1375
        %v1380 = vadd.f32 %v1356, %v1376
        %v1381 = vadd.f32 %v1357, %v1377
        %v1382 = vadd.f32 %v1358, %v1378
        %v1383 = vmul.f32 %v1310, 0.5
        %v1384 = vmul.f32 %v1315, 0.5
        %v1385 = vmul.f32 %v1320, 0.5
        %v1386 = vmul.f32 %v1325, 0.5
        %v1387 = vtanh.pop %v1383
        %v1388 = vtanh.pop %v1384
        %v1389 = vtanh.pop %v1385
        %v1390 = vtanh.pop %v1386
        %v1391 = vadd.f32 %v1387, 1.0
        %v1392 = vadd.f32 %v1388, 1.0
        %v1393 = vadd.f32 %v1389, 1.0
        %v1394 = vadd.f32 %v1390, 1.0
        %v1395 = vmul.f32 %v1391, 0.5
        %v1396 = vmul.f32 %v1392, 0.5
        %v1397 = vmul.f32 %v1393, 0.5
        %v1398 = vmul.f32 %v1394, 0.5
        %v1399 = vmul.f32 %v1395, %v1331
        %v1400 = vmul.f32 %v1396, %v1332
        %v1401 = vmul.f32 %v1397, %v1333
        %v1402 = vmul.f32 %v1398, %v1334
        %v1403 = vadd.f32 %v1379, %v1399
        %v1404 = vadd.f32 %v1380, %v1400
        %v1405 = vadd.f32 %v1381, %v1401
        %v1406 = vadd.f32 %v1382, %v1402
        %v1407 = vmul.f32 %v1311, 0.5
        %v1408 = vmul.f32 %v1316, 0.5
        %v1409 = vmul.f32 %v1321, 0.5
        %v1410 = vmul.f32 %v1326, 0.5
        %v1411 = vtanh.pop %v1407
        %v1412 = vtanh.pop %v1408
        %v1413 = vtanh.pop %v1409
        %v1414 = vtanh.pop %v1410
        %v1415 = vadd.f32 %v1411, 1.0
        %v1416 = vadd.f32 %v1412, 1.0
        %v1417 = vadd.f32 %v1413, 1.0
        %v1418 = vadd.f32 %v1414, 1.0
        %v1419 = vmul.f32 %v1415, 0.5
        %v1420 = vmul.f32 %v1416, 0.5
        %v1421 = vmul.f32 %v1417, 0.5
        %v1422 = vmul.f32 %v1418, 0.5
        %v1423 = vtanh.pop %v1403
        %v1424 = vtanh.pop %v1404
        %v1425 = vtanh.pop %v1405
        %v1426 = vtanh.pop %v1406
        %v1427 = vmul.f32 %v1419, %v1423
        %v1428 = vmul.f32 %v1420, %v1424
        %v1429 = vmul.f32 %v1421, %v1425
        %v1430 = vmul.f32 %v1422, %v1426
        %1431 = vst [vmem:[%s431] sm:$0xff] %v1427
        %1432 = vst [vmem:[%s431 + $0x8] sm:$0xff] %v1428
        %1433 = vst [vmem:[%s431 + $0x10] sm:$0xff] %v1429
        %1434 = vst [vmem:[%s431 + $0x18] sm:$0xff] %v1430
        %1435 = vst [vmem:[%s438] sm:$0xff] %v1403
        %1436 = vst [vmem:[%s438 + $0x8] sm:$0xff] %v1404
        %1437 = vst [vmem:[%s438 + $0x10] sm:$0xff] %v1405
        %1438 = vst [vmem:[%s438 + $0x18] sm:$0xff] %v1406
        %s1439 = sand.u32 %s188, 1
        %s1440 = scalar_lea.sflag [#allocation4], %s1439
        %s1441 = sand.u32 %s188, 1
        %s1442 = smul.addr %s1441, 32
        %s1443 = scalar_lea.vmem [#allocation11], %s1442
        %s1444 = sand.u32 %s214, 1
        %s1445 = scalar_lea.sflag [#allocation13], %s1444
        %s1446 = sand.u32 %s214, 1
        %s1447 = smul.addr %s1446, 32
        %s1448 = scalar_lea.vmem [#allocation12], %s1447
        // Predicated region
        $region65: #{tree_lstm.1} parent=43 // pred_check
          %p1449 = pneg %p198
        $region66: #{tree_lstm.1} parent=43 // pred_check_branch
          %1451 = sbr.rel (%p1449) target = $region68
        $region67: #{tree_lstm.1} parent=43 // pred_region
          %s1452 = smul.u32 4, %s34
          %s1454 = ssub.s32 512, 512
          %1455 = vsyncadd %s1440, %s1454
          %s1456 = smul.addr %s1452, 128
          %s1457 = scalar_lea.hbm %s6, %s1456
          %s1458 = sshll.u32 %s1443, 4
          %s1459 = int_to_ptr.vmem [resolvable:$true] %s1458
          %1464 = dma.vmem_to_hbm [thread:$0]  %s1459, 512, %s1457, %s1440, 128, 128, 8
        $region68: #{tree_lstm.1} parent=43 // pred_fallthru
          _
        // Predicated region
        $region69: #{tree_lstm.1} parent=43 // pred_check
          %p1465 = pneg %p224
        $region70: #{tree_lstm.1} parent=43 // pred_check_branch
          %1467 = sbr.rel (%p1465) target = $region72
        $region71: #{tree_lstm.1} parent=43 // pred_region
          %s1468 = smul.u32 4, %s34
          %s1470 = ssub.s32 512, 512
          %1471 = vsyncadd %s1445, %s1470
          %s1472 = smul.addr %s1468, 128
          %s1473 = scalar_lea.hbm %s7, %s1472
          %s1474 = sshll.u32 %s1448, 4
          %s1475 = int_to_ptr.vmem [resolvable:$true] %s1474
          %1480 = dma.vmem_to_hbm [thread:$0]  %s1475, 512, %s1473, %s1445, 128, 128, 8
        $region72: #{tree_lstm.1} parent=43 // pred_fallthru
          _
      $region44: #{tree_lstm.1} parent=5 // pred_fallthru
        _
      %p1481 = scmp.le.s32.totalorder 2, %s29
      // Predicated region
      $region73: #{tree_lstm.1} parent=5 // pred_check
        %p1482 = pneg %p1481
      $region74: #{tree_lstm.1} parent=5 // pred_check_branch
        %1484 = sbr.rel (%p1482) target = $region76
      $region75: #{tree_lstm.1} parent=5 // pred_region
        %s1485 = ssub.s32 %s29, 2
        // Predicated region
        $region77: #{tree_lstm.1} parent=75 // pred_check
          %p1486 = pneg %p204
        $region78: #{tree_lstm.1} parent=75 // pred_check_branch
          %1488 = sbr.rel (%p1486) target = $region80
        $region79: #{tree_lstm.1} parent=75 // pred_region
          %s1489 = sand.u32 %s189, 1
          %s1490 = scalar_lea.sflag [#allocation4], %s1489
          %s1491 = sand.u32 %s189, 1
          %s1492 = smul.addr %s1491, 32
          %s1493 = scalar_lea.vmem [#allocation11], %s1492
          %1494 = dma.done %s1490, 512
        $region80: #{tree_lstm.1} parent=75 // pred_fallthru
          _
        // Predicated region
        $region81: #{tree_lstm.1} parent=75 // pred_check
          %p1495 = pneg %p230
        $region82: #{tree_lstm.1} parent=75 // pred_check_branch
          %1497 = sbr.rel (%p1495) target = $region84
        $region83: #{tree_lstm.1} parent=75 // pred_region
          %s1498 = sand.u32 %s215, 1
          %s1499 = scalar_lea.sflag [#allocation13], %s1498
          %s1500 = sand.u32 %s215, 1
          %s1501 = smul.addr %s1500, 32
          %s1502 = scalar_lea.vmem [#allocation12], %s1501
          %1503 = dma.done %s1499, 512
        $region84: #{tree_lstm.1} parent=75 // pred_fallthru
          _
      $region76: #{tree_lstm.1} parent=5 // pred_fallthru
        _
    $region6: #{tree_lstm.1} parent=1 // loop_footer
      %s33 = sadd.s32 1, %s29
    $region7: #{tree_lstm.1} parent=1 // loop_footer_branch
      %28 = sbr.rel target = $region3
    $region8: #{tree_lstm.1} parent=1 // loop_exit
      _
    %1504 = vsyncpa [#allocation3], 1
    %s1505 = scalar_lea.sflag [#allocation3], 1
    %1506 = vsyncpa %s1505, 1
    %1507 = vsyncpa [#allocation6], 1
    %s1508 = scalar_lea.sflag [#allocation6], 1
    %1509 = vsyncpa %s1508, 1
    %1510 = vsyncpa [#allocation9], 1
    %s1511 = scalar_lea.sflag [#allocation9], 1
    %1512 = vsyncpa %s1511, 1
    %1513 = vsyncpa [#allocation4], 1
    %s1514 = scalar_lea.sflag [#allocation4], 1
    %1515 = vsyncpa %s1514, 1
    %1516 = vsyncpa [#allocation13], 1
    %s1517 = scalar_lea.sflag [#allocation13], 1
    %1518 = vsyncpa %s1517, 1

</llo_original>
